<compile_context>
chip_gen: v7x
topology: tpu7x:2x2x1
jax: 0.10.0
libtpu: 0.0.40
codegen_flags: <defaults>
</compile_context>

<pallas_src>
import functools

import jax
import jax.numpy as jnp
from jax.experimental import pallas as pl
from jax.experimental.pallas import tpu as pltpu


def _round_up(x, m):
    return (x + m - 1) // m * m


def _layernorm(x, gamma, beta, eps=1e-5):
    mean = jnp.mean(x, axis=-1, keepdims=True)
    xc = x - mean
    var = jnp.mean(xc * xc, axis=-1, keepdims=True)
    return xc * jax.lax.rsqrt(var + eps) * gamma + beta


def attentive_block_kernel(xq_ref, xkv_ref, posq_ref, posk_ref,
                           gq_ref, bq_ref, gk_ref, bk_ref, gv_ref, bv_ref,
                           wq_ref, wk_ref, wv_ref, wp_ref, bp_ref,
                           out_ref, attn_scr, *,
                           batch_block, n_q, n_kv, num_heads, head_dim,
                           compute_dtype):
    f32 = jnp.float32
    cdt = compute_dtype
    bb = batch_block
    hd = head_dim                       # per-head width (possibly lane-padded)
    c_in = xq_ref.shape[-1]
    c_heads = num_heads * hd

    # ---- LayerNorms in f32 on the flattened (Bb*N, C) slabs ----------------
    xq = xq_ref[...].reshape(bb * n_q, c_in).astype(f32)
    xkv = xkv_ref[...].reshape(bb * n_kv, c_in).astype(f32)
    posq = posq_ref[...].reshape(bb * n_q, c_in).astype(f32)
    posk = posk_ref[...].reshape(bb * n_kv, c_in).astype(f32)

    q_in = _layernorm(xq + posq, gq_ref[...], bq_ref[...])
    k_in = _layernorm(xkv + posk, gk_ref[...], bk_ref[...])
    v_in = _layernorm(xkv, gv_ref[...], bv_ref[...])

    # ---- Q/K/V projections: one full-row matmul each (weights already
    #      (in, out), scale folded into Wq, qkv_bias=False) ------------------
    q = jnp.dot(q_in.astype(cdt), wq_ref[...], preferred_element_type=f32)
    k = jnp.dot(k_in.astype(cdt), wk_ref[...], preferred_element_type=f32)
    v = jnp.dot(v_in.astype(cdt), wv_ref[...], preferred_element_type=f32)

    # Cast to the matmul dtype once (not per head) and restore the batch dim.
    q = q.reshape(bb, n_q, c_heads).astype(cdt)
    k = k.reshape(bb, n_kv, c_heads).astype(cdt)
    v = v.reshape(bb, n_kv, c_heads).astype(cdt)

    # ---- per-head attention, batched over the batch block ------------------
    # With lane-aligned head slabs (hd multiple of 128) every slice/store here
    # is tile-aligned: no relayouts, no masked stores.
    for h in range(num_heads):
        cs = slice(h * hd, (h + 1) * hd)
        qh = q[:, :, cs]                                   # (Bb, Nq, hd)
        kh = k[:, :, cs]                                   # (Bb, Nk, hd)
        vh = v[:, :, cs]                                   # (Bb, Nk, hd)
        s = jnp.einsum('bqd,bkd->bqk', qh, kh,
                       preferred_element_type=f32)         # (Bb, Nq, Nk)
        m = jnp.max(s, axis=-1, keepdims=True)
        e = jnp.exp(s - m)
        p = e * pl.reciprocal(jnp.sum(e, axis=-1, keepdims=True), approx=True)
        oh = jnp.einsum('bqk,bkd->bqd', p.astype(cdt), vh,
                        preferred_element_type=f32)        # (Bb, Nq, hd)
        attn_scr[:, :, cs] = oh.astype(attn_scr.dtype)

    # ---- output projection: single full-K matmul + bias --------------------
    attn_flat = attn_scr[...].reshape(bb * n_q, c_heads)
    proj = jnp.dot(attn_flat, wp_ref[...], preferred_element_type=f32)
    proj = proj + bp_ref[...]
    out_ref[...] = proj.reshape(out_ref.shape).astype(out_ref.dtype)


def prepare_attentive_block_params(params, *, num_heads, qk_scale=None,
                                   compute_dtype=jnp.bfloat16,
                                   align_heads=None):
    """One-time host-side parameter prep (hoisted out of the per-call path).

    Transposes weights to (in, out), folds the attention scale into W_q,
    optionally zero-pads each head's weight slab to a 128-lane-aligned width
    (exact: padded lanes contribute zero logits / zero rows), and casts the
    weights to `compute_dtype` (bf16 default).
    """
    f32 = jnp.float32
    dim = params["w_q"].shape[1]
    out_dim = params["w_proj"].shape[0]
    head_dim = dim // num_heads
    scale = qk_scale if qk_scale is not None else head_dim ** -0.5
    if align_heads is None:
        align_heads = (head_dim % 128) != 0
    hd_pad = _round_up(head_dim, 128) if align_heads else head_dim
    c_heads = num_heads * hd_pad

    def pad_cols(w_t):  # (dim, H*Dh) -> (dim, H*hd_pad), zero-filled per head
        if hd_pad == head_dim:
            return w_t
        w3 = w_t.reshape(dim, num_heads, head_dim)
        w3 = jnp.pad(w3, ((0, 0), (0, 0), (0, hd_pad - head_dim)))
        return w3.reshape(dim, c_heads)

    def pad_rows(w_t):  # (H*Dh, out) -> (H*hd_pad, out), zero-filled per head
        if hd_pad == head_dim:
            return w_t
        w3 = w_t.reshape(num_heads, head_dim, out_dim)
        w3 = jnp.pad(w3, ((0, 0), (0, hd_pad - head_dim), (0, 0)))
        return w3.reshape(c_heads, out_dim)

    return {
        "wq_t": pad_cols((params["w_q"].astype(f32) * scale).T).astype(compute_dtype),
        "wk_t": pad_cols(params["w_k"].astype(f32).T).astype(compute_dtype),
        "wv_t": pad_cols(params["w_v"].astype(f32).T).astype(compute_dtype),
        "wp_t": pad_rows(params["w_proj"].astype(f32).T).astype(compute_dtype),
        "b_proj": params["b_proj"].reshape(1, out_dim).astype(f32),
        "g_q": params["g_q"].reshape(1, dim).astype(f32),
        "b_q": params["b_q"].reshape(1, dim).astype(f32),
        "g_k": params["g_k"].reshape(1, dim).astype(f32),
        "b_k": params["b_k"].reshape(1, dim).astype(f32),
        "g_v": params["g_v"].reshape(1, dim).astype(f32),
        "b_v": params["b_v"].reshape(1, dim).astype(f32),
        # static metadata
        "dim": dim, "out_dim": out_dim, "num_heads": num_heads,
        "head_dim_padded": hd_pad, "compute_dtype": compute_dtype,
    }


def _pick_batch_block(batch, n_q, n_kv, target_rows=256, max_rows=2048):
    """Largest divisor of `batch` whose row count stays bounded, preferring
    batch_block*n_q >= target_rows so the projections fill the MXU rows."""
    best = 1
    for d in range(1, batch + 1):
        if batch % d:
            continue
        if d * max(n_q, n_kv) > max_rows:
            break
        best = d
        if d * n_q >= target_rows:
            break
    return best


def attentive_block(x_q, x_kv, pos_q, pos_k, prepared, *, batch_block=None,
                    bool_masked_pos=None, rel_pos_bias=None):
    """AttentiveBlock forward. bool_masked_pos / rel_pos_bias are accepted
    (matching the PyTorch signature) but unused by the reference forward."""
    del bool_masked_pos, rel_pos_bias
    B, n_q, dim = x_q.shape
    n_kv = x_kv.shape[1]
    assert dim == prepared["dim"]
    num_heads = prepared["num_heads"]
    hd = prepared["head_dim_padded"]
    c_heads = num_heads * hd
    out_dim = prepared["out_dim"]
    cdt = prepared["compute_dtype"]

    bb = batch_block if batch_block is not None else _pick_batch_block(B, n_q, n_kv)
    assert B % bb == 0, (B, bb)
    grid = (B // bb,)

    # Explicit VMEM budget (32 MiB floor == v6e/v7x scoped default; keep well
    # under v7x's 64 MiB physical cap).
    x_bytes = jnp.dtype(x_q.dtype).itemsize
    c_bytes = jnp.dtype(cdt).itemsize
    est = (2 * 2 * (bb * n_q + bb * n_kv) * dim * x_bytes             # x/pos, 2-buffered
           + 2 * (3 * dim * c_heads + c_heads * out_dim) * c_bytes    # weights, 2-buffered
           + 2 * bb * n_q * out_dim * x_bytes                         # output, 2-buffered
           + bb * n_q * c_heads * c_bytes                             # attn scratch
           + 4 * (3 * bb * (n_q + n_kv) * max(dim, c_heads)           # f32 live values
                  + bb * n_q * n_kv))
    vmem_limit = int(min(max(2 * est, 32 * 1024 * 1024), 96 * 1024 * 1024))

    seq_spec = lambda n, c: pl.BlockSpec((bb, n, c), lambda i: (i, 0, 0))
    vec_spec = pl.BlockSpec((1, dim), lambda i: (0, 0))
    # Grid-invariant resident weights. (On v7x, pipeline_mode=pl.Buffered(1)
    # on these specs halves their VMEM with no extra DMA.)
    wqkv_spec = pl.BlockSpec((dim, c_heads), lambda i: (0, 0))
    wp_spec = pl.BlockSpec((c_heads, out_dim), lambda i: (0, 0))
    bp_spec = pl.BlockSpec((1, out_dim), lambda i: (0, 0))

    kernel = functools.partial(
        attentive_block_kernel,
        batch_block=bb, n_q=n_q, n_kv=n_kv, num_heads=num_heads,
        head_dim=hd, compute_dtype=cdt)

    return pl.pallas_call(
        kernel,
        out_shape=jax.ShapeDtypeStruct((B, n_q, out_dim), x_q.dtype),
        grid_spec=pltpu.PrefetchScalarGridSpec(
            num_scalar_prefetch=0,
            grid=grid,
            in_specs=[
                seq_spec(n_q, dim), seq_spec(n_kv, dim),     # x_q, x_kv
                seq_spec(n_q, dim), seq_spec(n_kv, dim),     # pos_q, pos_k
                vec_spec, vec_spec,                          # norm1_q gamma/beta
                vec_spec, vec_spec,                          # norm1_k gamma/beta
                vec_spec, vec_spec,                          # norm1_v gamma/beta
                wqkv_spec, wqkv_spec, wqkv_spec,             # Wq_t, Wk_t, Wv_t
                wp_spec, bp_spec,                            # Wproj_t, bproj
            ],
            out_specs=pl.BlockSpec((bb, n_q, out_dim), lambda i: (i, 0, 0)),
            scratch_shapes=[pltpu.VMEM((bb, n_q, c_heads), cdt)],  # head outputs
        ),
        compiler_params=pltpu.CompilerParams(
            dimension_semantics=("parallel",),
            vmem_limit_bytes=vmem_limit),
    )(x_q, x_kv, pos_q, pos_k,
      prepared["g_q"], prepared["b_q"], prepared["g_k"], prepared["b_k"],
      prepared["g_v"], prepared["b_v"],
      prepared["wq_t"], prepared["wk_t"], prepared["wv_t"],
      prepared["wp_t"], prepared["b_proj"])


def _reference(x_q, x_kv, pos_q, pos_k, params, num_heads):
    """Pure-JAX f32 reference mirroring the PyTorch forward."""
    def ln(x, g, b):
        mean = x.mean(-1, keepdims=True)
        var = ((x - mean) ** 2).mean(-1, keepdims=True)
        return (x - mean) / jnp.sqrt(var + 1e-5) * g + b

    C = x_q.shape[-1]
    Dh = C // num_heads
    xq = ln(x_q + pos_q, params["g_q"][0], params["b_q"][0])
    xk = ln(x_kv + pos_k, params["g_k"][0], params["b_k"][0])
    xv = ln(x_kv, params["g_v"][0], params["b_v"][0])
    q = xq @ params["w_q"].T
    k = xk @ params["w_k"].T
    v = xv @ params["w_v"].T
    B, Nq, _ = q.shape
    Nk = k.shape[1]
    q = q.reshape(B, Nq, num_heads, Dh).transpose(0, 2, 1, 3) * (Dh ** -0.5)
    k = k.reshape(B, Nk, num_heads, Dh).transpose(0, 2, 1, 3)
    v = v.reshape(B, Nk, num_heads, Dh).transpose(0, 2, 1, 3)
    attn = jax.nn.softmax(q @ k.transpose(0, 1, 3, 2), axis=-1)
    o = (attn @ v).transpose(0, 2, 1, 3).reshape(B, Nq, C)
    return o @ params["w_proj"].T + params["b_proj"][0]


if __name__ == "__main__":
    key = jax.random.PRNGKey(0)
    B, Nq, Nk, C, H = 2, 8, 16, 32, 4   # dim=32, num_heads=4 -> head_dim=8

    ks = jax.random.split(key, 9)
    x_q = jax.random.normal(ks[0], (B, Nq, C), jnp.float32)
    x_kv = jax.random.normal(ks[1], (B, Nk, C), jnp.float32)
    pos_q = 0.1 * jax.random.normal(ks[2], (B, Nq, C), jnp.float32)
    pos_k = 0.1 * jax.random.normal(ks[3], (B, Nk, C), jnp.float32)
    bool_masked_pos = jnp.zeros((B, Nk), jnp.bool_)   # unused by forward

    params = {
        # LayerNorm affine params (gamma=1, beta=0, as in nn.LayerNorm init)
        "g_q": jnp.ones((1, C), jnp.float32), "b_q": jnp.zeros((1, C), jnp.float32),
        "g_k": jnp.ones((1, C), jnp.float32), "b_k": jnp.zeros((1, C), jnp.float32),
        "g_v": jnp.ones((1, C), jnp.float32), "b_v": jnp.zeros((1, C), jnp.float32),
        # Linear weights (out_features, in_features); qkv_bias=False
        "w_q": 0.05 * jax.random.normal(ks[4], (C, C), jnp.float32),
        "w_k": 0.05 * jax.random.normal(ks[5], (C, C), jnp.float32),
        "w_v": 0.05 * jax.random.normal(ks[6], (C, C), jnp.float32),
        "w_proj": 0.05 * jax.random.normal(ks[7], (C, C), jnp.float32),
        "b_proj": 0.01 * jax.random.normal(ks[8], (1, C), jnp.float32),
    }

    ref = _reference(x_q, x_kv, pos_q, pos_k, params, H)

    # 1) f32 compute path, unpadded head slabs (tight numerical check).
    prep_f32 = prepare_attentive_block_params(
        params, num_heads=H, compute_dtype=jnp.float32, align_heads=False)
    out = jax.block_until_ready(
        attentive_block(x_q, x_kv, pos_q, pos_k, prep_f32,
                        bool_masked_pos=bool_masked_pos))
    assert out.shape == (B, Nq, C), out.shape
    assert jnp.allclose(out, ref, rtol=5e-3, atol=5e-3), \
        float(jnp.max(jnp.abs(out - ref)))

    # 2) production path: bf16 MXU operands + 128-lane-aligned head slabs
    #    (f32 LayerNorm / softmax / accumulation).
    prep_bf16 = prepare_attentive_block_params(params, num_heads=H)
    out_bf16 = jax.block_until_ready(
        attentive_block(x_q, x_kv, pos_q, pos_k, prep_bf16,
                        bool_masked_pos=bool_masked_pos))
    assert out_bf16.shape == (B, Nq, C), out_bf16.shape
    assert jnp.allclose(out_bf16, ref, rtol=5e-2, atol=5e-2), \
        float(jnp.max(jnp.abs(out_bf16 - ref)))

    # 3) multi-step grid (batch_block=1) to exercise the batch-blocked
    #    index maps on a grid with more than one step.
    out_b1 = jax.block_until_ready(
        attentive_block(x_q, x_kv, pos_q, pos_k, prep_bf16, batch_block=1,
                        bool_masked_pos=bool_masked_pos))
    assert jnp.allclose(out_b1, ref, rtol=5e-2, atol=5e-2), \
        float(jnp.max(jnp.abs(out_b1 - ref)))

    print("KERNEL_OK")
</pallas_src>

<mosaic_0001>
module attributes {stable_mosaic.version = 11 : i64} {
  func.func @attentive_block_kernel(%arg0: i32, %arg1: memref<2x8x32xf32, #tpu.memory_space<vmem>>, %arg2: memref<2x16x32xf32, #tpu.memory_space<vmem>>, %arg3: memref<2x8x32xf32, #tpu.memory_space<vmem>>, %arg4: memref<2x16x32xf32, #tpu.memory_space<vmem>>, %arg5: memref<1x32xf32, #tpu.memory_space<vmem>>, %arg6: memref<1x32xf32, #tpu.memory_space<vmem>>, %arg7: memref<1x32xf32, #tpu.memory_space<vmem>>, %arg8: memref<1x32xf32, #tpu.memory_space<vmem>>, %arg9: memref<1x32xf32, #tpu.memory_space<vmem>>, %arg10: memref<1x32xf32, #tpu.memory_space<vmem>>, %arg11: memref<32x32xf32, #tpu.memory_space<vmem>>, %arg12: memref<32x32xf32, #tpu.memory_space<vmem>>, %arg13: memref<32x32xf32, #tpu.memory_space<vmem>>, %arg14: memref<32x32xf32, #tpu.memory_space<vmem>>, %arg15: memref<1x32xf32, #tpu.memory_space<vmem>>, %arg16: memref<2x8x32xf32, #tpu.memory_space<vmem>>, %arg17: memref<2x8x32xf32, #tpu.memory_space<vmem>>) attributes {dimension_semantics = [#tpu.dimension_semantics<parallel>], iteration_bounds = array<i64: 1>, scalar_prefetch = 0 : i64, scratch_operands = 1 : i64, tpu.core_type = #tpu.core_type<tc>, window_params = [{transform_indices = @transform_0, window_bounds = array<i64: 2, 8, 32>}, {transform_indices = @transform_1, window_bounds = array<i64: 2, 16, 32>}, {transform_indices = @transform_2, window_bounds = array<i64: 2, 8, 32>}, {transform_indices = @transform_3, window_bounds = array<i64: 2, 16, 32>}, {pipeline_mode = #tpu.pipeline_mode<synchronous>, transform_indices = @transform_4, window_bounds = array<i64: 1, 32>}, {pipeline_mode = #tpu.pipeline_mode<synchronous>, transform_indices = @transform_5, window_bounds = array<i64: 1, 32>}, {pipeline_mode = #tpu.pipeline_mode<synchronous>, transform_indices = @transform_6, window_bounds = array<i64: 1, 32>}, {pipeline_mode = #tpu.pipeline_mode<synchronous>, transform_indices = @transform_7, window_bounds = array<i64: 1, 32>}, {pipeline_mode = #tpu.pipeline_mode<synchronous>, transform_indices = @transform_8, window_bounds = array<i64: 1, 32>}, {pipeline_mode = #tpu.pipeline_mode<synchronous>, transform_indices = @transform_9, window_bounds = array<i64: 1, 32>}, {pipeline_mode = #tpu.pipeline_mode<synchronous>, transform_indices = @transform_10, window_bounds = array<i64: 32, 32>}, {pipeline_mode = #tpu.pipeline_mode<synchronous>, transform_indices = @transform_11, window_bounds = array<i64: 32, 32>}, {pipeline_mode = #tpu.pipeline_mode<synchronous>, transform_indices = @transform_12, window_bounds = array<i64: 32, 32>}, {pipeline_mode = #tpu.pipeline_mode<synchronous>, transform_indices = @transform_13, window_bounds = array<i64: 32, 32>}, {pipeline_mode = #tpu.pipeline_mode<synchronous>, transform_indices = @transform_14, window_bounds = array<i64: 1, 32>}, {transform_indices = @transform_15, window_bounds = array<i64: 2, 8, 32>}]} {
    %c0 = arith.constant 0 : index
    %c0_0 = arith.constant 0 : index
    %c0_1 = arith.constant 0 : index
    %0 = vector.load %arg1[%c0, %c0_0, %c0_1] : memref<2x8x32xf32, #tpu.memory_space<vmem>>, vector<2x8x32xf32>
    %1 = vector.shape_cast %0 : vector<2x8x32xf32> to vector<16x32xf32>
    %c0_2 = arith.constant 0 : index
    %c0_3 = arith.constant 0 : index
    %c0_4 = arith.constant 0 : index
    %2 = vector.load %arg2[%c0_2, %c0_3, %c0_4] : memref<2x16x32xf32, #tpu.memory_space<vmem>>, vector<2x16x32xf32>
    %3 = vector.shape_cast %2 : vector<2x16x32xf32> to vector<32x32xf32>
    %c0_5 = arith.constant 0 : index
    %c0_6 = arith.constant 0 : index
    %c0_7 = arith.constant 0 : index
    %4 = vector.load %arg3[%c0_5, %c0_6, %c0_7] : memref<2x8x32xf32, #tpu.memory_space<vmem>>, vector<2x8x32xf32>
    %5 = vector.shape_cast %4 : vector<2x8x32xf32> to vector<16x32xf32>
    %c0_8 = arith.constant 0 : index
    %c0_9 = arith.constant 0 : index
    %c0_10 = arith.constant 0 : index
    %6 = vector.load %arg4[%c0_8, %c0_9, %c0_10] : memref<2x16x32xf32, #tpu.memory_space<vmem>>, vector<2x16x32xf32>
    %7 = vector.shape_cast %6 : vector<2x16x32xf32> to vector<32x32xf32>
    %8 = arith.addf %1, %5 : vector<16x32xf32>
    %c0_11 = arith.constant 0 : index
    %c0_12 = arith.constant 0 : index
    %9 = vector.load %arg5[%c0_11, %c0_12] : memref<1x32xf32, #tpu.memory_space<vmem>>, vector<1x32xf32>
    %c0_13 = arith.constant 0 : index
    %c0_14 = arith.constant 0 : index
    %10 = vector.load %arg6[%c0_13, %c0_14] : memref<1x32xf32, #tpu.memory_space<vmem>>, vector<1x32xf32>
    %cst = arith.constant dense<0.000000e+00> : vector<16xf32>
    %11 = vector.multi_reduction <add>, %8, %cst [1] : vector<16x32xf32> to vector<16xf32>
    %12 = vector.shape_cast %11 : vector<16xf32> to vector<16x1xf32>
    %cst_15 = arith.constant 3.200000e+01 : f32
    %13 = vector.broadcast %cst_15 : f32 to vector<16x1xf32>
    %14 = arith.divf %12, %13 : vector<16x1xf32>
    %15 = vector.broadcast %14 : vector<16x1xf32> to vector<16x32xf32>
    %16 = arith.subf %8, %15 : vector<16x32xf32>
    %17 = arith.mulf %16, %16 : vector<16x32xf32>
    %cst_16 = arith.constant dense<0.000000e+00> : vector<16xf32>
    %18 = vector.multi_reduction <add>, %17, %cst_16 [1] : vector<16x32xf32> to vector<16xf32>
    %19 = vector.shape_cast %18 : vector<16xf32> to vector<16x1xf32>
    %cst_17 = arith.constant 3.200000e+01 : f32
    %20 = vector.broadcast %cst_17 : f32 to vector<16x1xf32>
    %21 = arith.divf %19, %20 : vector<16x1xf32>
    %cst_18 = arith.constant 9.99999974E-6 : f32
    %22 = vector.broadcast %cst_18 : f32 to vector<16x1xf32>
    %23 = arith.addf %21, %22 : vector<16x1xf32>
    %24 = math.rsqrt %23 : vector<16x1xf32>
    %25 = vector.broadcast %24 : vector<16x1xf32> to vector<16x32xf32>
    %26 = arith.mulf %16, %25 : vector<16x32xf32>
    %27 = vector.broadcast %9 : vector<1x32xf32> to vector<16x32xf32>
    %28 = arith.mulf %26, %27 : vector<16x32xf32>
    %29 = vector.broadcast %10 : vector<1x32xf32> to vector<16x32xf32>
    %30 = arith.addf %28, %29 : vector<16x32xf32>
    %31 = arith.addf %3, %7 : vector<32x32xf32>
    %c0_19 = arith.constant 0 : index
    %c0_20 = arith.constant 0 : index
    %32 = vector.load %arg7[%c0_19, %c0_20] : memref<1x32xf32, #tpu.memory_space<vmem>>, vector<1x32xf32>
    %c0_21 = arith.constant 0 : index
    %c0_22 = arith.constant 0 : index
    %33 = vector.load %arg8[%c0_21, %c0_22] : memref<1x32xf32, #tpu.memory_space<vmem>>, vector<1x32xf32>
    %cst_23 = arith.constant dense<0.000000e+00> : vector<32xf32>
    %34 = vector.multi_reduction <add>, %31, %cst_23 [1] : vector<32x32xf32> to vector<32xf32>
    %35 = vector.shape_cast %34 : vector<32xf32> to vector<32x1xf32>
    %cst_24 = arith.constant 3.200000e+01 : f32
    %36 = vector.broadcast %cst_24 : f32 to vector<32x1xf32>
    %37 = arith.divf %35, %36 : vector<32x1xf32>
    %38 = vector.broadcast %37 : vector<32x1xf32> to vector<32x32xf32>
    %39 = arith.subf %31, %38 : vector<32x32xf32>
    %40 = arith.mulf %39, %39 : vector<32x32xf32>
    %cst_25 = arith.constant dense<0.000000e+00> : vector<32xf32>
    %41 = vector.multi_reduction <add>, %40, %cst_25 [1] : vector<32x32xf32> to vector<32xf32>
    %42 = vector.shape_cast %41 : vector<32xf32> to vector<32x1xf32>
    %cst_26 = arith.constant 3.200000e+01 : f32
    %43 = vector.broadcast %cst_26 : f32 to vector<32x1xf32>
    %44 = arith.divf %42, %43 : vector<32x1xf32>
    %cst_27 = arith.constant 9.99999974E-6 : f32
    %45 = vector.broadcast %cst_27 : f32 to vector<32x1xf32>
    %46 = arith.addf %44, %45 : vector<32x1xf32>
    %47 = math.rsqrt %46 : vector<32x1xf32>
    %48 = vector.broadcast %47 : vector<32x1xf32> to vector<32x32xf32>
    %49 = arith.mulf %39, %48 : vector<32x32xf32>
    %50 = vector.broadcast %32 : vector<1x32xf32> to vector<32x32xf32>
    %51 = arith.mulf %49, %50 : vector<32x32xf32>
    %52 = vector.broadcast %33 : vector<1x32xf32> to vector<32x32xf32>
    %53 = arith.addf %51, %52 : vector<32x32xf32>
    %c0_28 = arith.constant 0 : index
    %c0_29 = arith.constant 0 : index
    %54 = vector.load %arg9[%c0_28, %c0_29] : memref<1x32xf32, #tpu.memory_space<vmem>>, vector<1x32xf32>
    %c0_30 = arith.constant 0 : index
    %c0_31 = arith.constant 0 : index
    %55 = vector.load %arg10[%c0_30, %c0_31] : memref<1x32xf32, #tpu.memory_space<vmem>>, vector<1x32xf32>
    %cst_32 = arith.constant dense<0.000000e+00> : vector<32xf32>
    %56 = vector.multi_reduction <add>, %3, %cst_32 [1] : vector<32x32xf32> to vector<32xf32>
    %57 = vector.shape_cast %56 : vector<32xf32> to vector<32x1xf32>
    %cst_33 = arith.constant 3.200000e+01 : f32
    %58 = vector.broadcast %cst_33 : f32 to vector<32x1xf32>
    %59 = arith.divf %57, %58 : vector<32x1xf32>
    %60 = vector.broadcast %59 : vector<32x1xf32> to vector<32x32xf32>
    %61 = arith.subf %3, %60 : vector<32x32xf32>
    %62 = arith.mulf %61, %61 : vector<32x32xf32>
    %cst_34 = arith.constant dense<0.000000e+00> : vector<32xf32>
    %63 = vector.multi_reduction <add>, %62, %cst_34 [1] : vector<32x32xf32> to vector<32xf32>
    %64 = vector.shape_cast %63 : vector<32xf32> to vector<32x1xf32>
    %cst_35 = arith.constant 3.200000e+01 : f32
    %65 = vector.broadcast %cst_35 : f32 to vector<32x1xf32>
    %66 = arith.divf %64, %65 : vector<32x1xf32>
    %cst_36 = arith.constant 9.99999974E-6 : f32
    %67 = vector.broadcast %cst_36 : f32 to vector<32x1xf32>
    %68 = arith.addf %66, %67 : vector<32x1xf32>
    %69 = math.rsqrt %68 : vector<32x1xf32>
    %70 = vector.broadcast %69 : vector<32x1xf32> to vector<32x32xf32>
    %71 = arith.mulf %61, %70 : vector<32x32xf32>
    %72 = vector.broadcast %54 : vector<1x32xf32> to vector<32x32xf32>
    %73 = arith.mulf %71, %72 : vector<32x32xf32>
    %74 = vector.broadcast %55 : vector<1x32xf32> to vector<32x32xf32>
    %75 = arith.addf %73, %74 : vector<32x32xf32>
    %c0_37 = arith.constant 0 : index
    %c0_38 = arith.constant 0 : index
    %76 = vector.load %arg11[%c0_37, %c0_38] : memref<32x32xf32, #tpu.memory_space<vmem>>, vector<32x32xf32>
    %cst_39 = arith.constant dense<0.000000e+00> : vector<16x32xf32>
    %77 = tpu.matmul %30, %76, %cst_39 {dimension_numbers = #tpu.dot_dimension_numbers<[1], [0], [0], [1], [0, 0, 1, 1], [], []>} : vector<16x32xf32>, vector<32x32xf32>, vector<16x32xf32> -> vector<16x32xf32>
    %c0_40 = arith.constant 0 : index
    %c0_41 = arith.constant 0 : index
    %78 = vector.load %arg12[%c0_40, %c0_41] : memref<32x32xf32, #tpu.memory_space<vmem>>, vector<32x32xf32>
    %cst_42 = arith.constant dense<0.000000e+00> : vector<32x32xf32>
    %79 = tpu.matmul %53, %78, %cst_42 {dimension_numbers = #tpu.dot_dimension_numbers<[1], [0], [0], [1], [0, 0, 1, 1], [], []>} : vector<32x32xf32>, vector<32x32xf32>, vector<32x32xf32> -> vector<32x32xf32>
    %c0_43 = arith.constant 0 : index
    %c0_44 = arith.constant 0 : index
    %80 = vector.load %arg13[%c0_43, %c0_44] : memref<32x32xf32, #tpu.memory_space<vmem>>, vector<32x32xf32>
    %cst_45 = arith.constant dense<0.000000e+00> : vector<32x32xf32>
    %81 = tpu.matmul %75, %80, %cst_45 {dimension_numbers = #tpu.dot_dimension_numbers<[1], [0], [0], [1], [0, 0, 1, 1], [], []>} : vector<32x32xf32>, vector<32x32xf32>, vector<32x32xf32> -> vector<32x32xf32>
    %82 = vector.shape_cast %77 : vector<16x32xf32> to vector<2x8x32xf32>
    %83 = vector.shape_cast %79 : vector<32x32xf32> to vector<2x16x32xf32>
    %84 = vector.shape_cast %81 : vector<32x32xf32> to vector<2x16x32xf32>
    %85 = vector.extract_strided_slice %82 {offsets = [0, 0, 0], sizes = [2, 8, 8], strides = [1, 1, 1]} : vector<2x8x32xf32> to vector<2x8x8xf32>
    %86 = vector.extract_strided_slice %83 {offsets = [0, 0, 0], sizes = [2, 16, 8], strides = [1, 1, 1]} : vector<2x16x32xf32> to vector<2x16x8xf32>
    %87 = vector.extract_strided_slice %84 {offsets = [0, 0, 0], sizes = [2, 16, 8], strides = [1, 1, 1]} : vector<2x16x32xf32> to vector<2x16x8xf32>
    "tpu.trace_start"() <{level = 10 : i32, message = "bqd,bkd->bqk"}> : () -> ()
    %cst_46 = arith.constant dense<0.000000e+00> : vector<2x8x16xf32>
    %88 = tpu.matmul %85, %86, %cst_46 {dimension_numbers = #tpu.dot_dimension_numbers<[2], [2], [1], [1], [0, 0, 0, 1, 1, 1], [0], [0]>} : vector<2x8x8xf32>, vector<2x16x8xf32>, vector<2x8x16xf32> -> vector<2x8x16xf32>
    "tpu.trace_stop"() : () -> ()
    %cst_47 = arith.constant dense<0xFF800000> : vector<2x8xf32>
    %89 = vector.multi_reduction <maximumf>, %88, %cst_47 [2] : vector<2x8x16xf32> to vector<2x8xf32>
    %90 = vector.shape_cast %89 : vector<2x8xf32> to vector<2x8x1xf32>
    %91 = vector.broadcast %90 : vector<2x8x1xf32> to vector<2x8x16xf32>
    %92 = arith.subf %88, %91 : vector<2x8x16xf32>
    %93 = math.exp %92 : vector<2x8x16xf32>
    %cst_48 = arith.constant dense<0.000000e+00> : vector<2x8xf32>
    %94 = vector.multi_reduction <add>, %93, %cst_48 [2] : vector<2x8x16xf32> to vector<2x8xf32>
    %95 = vector.shape_cast %94 : vector<2x8xf32> to vector<2x8x1xf32>
    %96 = tpu.reciprocal %95 {approx = true} : vector<2x8x1xf32> -> vector<2x8x1xf32>
    %97 = vector.broadcast %96 : vector<2x8x1xf32> to vector<2x8x16xf32>
    %98 = arith.mulf %93, %97 : vector<2x8x16xf32>
    "tpu.trace_start"() <{level = 10 : i32, message = "bqk,bkd->bqd"}> : () -> ()
    %cst_49 = arith.constant dense<0.000000e+00> : vector<2x8x8xf32>
    %99 = tpu.matmul %98, %87, %cst_49 {dimension_numbers = #tpu.dot_dimension_numbers<[2], [1], [1], [2], [0, 0, 0, 1, 1, 2], [0], [0]>} : vector<2x8x16xf32>, vector<2x16x8xf32>, vector<2x8x8xf32> -> vector<2x8x8xf32>
    "tpu.trace_stop"() : () -> ()
    %c0_50 = arith.constant 0 : index
    %c0_51 = arith.constant 0 : index
    %c0_52 = arith.constant 0 : index
    %100 = vector.load %arg17[%c0_50, %c0_51, %c0_52] : memref<2x8x32xf32, #tpu.memory_space<vmem>>, vector<2x8x8xf32>
    tpu.vector_store %arg17[%c0_50, %c0_51, %c0_52], %99 {strides = array<i32>} : memref<2x8x32xf32, #tpu.memory_space<vmem>>, vector<2x8x8xf32>,
    %101 = vector.extract_strided_slice %82 {offsets = [0, 0, 8], sizes = [2, 8, 8], strides = [1, 1, 1]} : vector<2x8x32xf32> to vector<2x8x8xf32>
    %102 = vector.extract_strided_slice %83 {offsets = [0, 0, 8], sizes = [2, 16, 8], strides = [1, 1, 1]} : vector<2x16x32xf32> to vector<2x16x8xf32>
    %103 = vector.extract_strided_slice %84 {offsets = [0, 0, 8], sizes = [2, 16, 8], strides = [1, 1, 1]} : vector<2x16x32xf32> to vector<2x16x8xf32>
    "tpu.trace_start"() <{level = 10 : i32, message = "bqd,bkd->bqk"}> : () -> ()
    %cst_53 = arith.constant dense<0.000000e+00> : vector<2x8x16xf32>
    %104 = tpu.matmul %101, %102, %cst_53 {dimension_numbers = #tpu.dot_dimension_numbers<[2], [2], [1], [1], [0, 0, 0, 1, 1, 1], [0], [0]>} : vector<2x8x8xf32>, vector<2x16x8xf32>, vector<2x8x16xf32> -> vector<2x8x16xf32>
    "tpu.trace_stop"() : () -> ()
    %cst_54 = arith.constant dense<0xFF800000> : vector<2x8xf32>
    %105 = vector.multi_reduction <maximumf>, %104, %cst_54 [2] : vector<2x8x16xf32> to vector<2x8xf32>
    %106 = vector.shape_cast %105 : vector<2x8xf32> to vector<2x8x1xf32>
    %107 = vector.broadcast %106 : vector<2x8x1xf32> to vector<2x8x16xf32>
    %108 = arith.subf %104, %107 : vector<2x8x16xf32>
    %109 = math.exp %108 : vector<2x8x16xf32>
    %cst_55 = arith.constant dense<0.000000e+00> : vector<2x8xf32>
    %110 = vector.multi_reduction <add>, %109, %cst_55 [2] : vector<2x8x16xf32> to vector<2x8xf32>
    %111 = vector.shape_cast %110 : vector<2x8xf32> to vector<2x8x1xf32>
    %112 = tpu.reciprocal %111 {approx = true} : vector<2x8x1xf32> -> vector<2x8x1xf32>
    %113 = vector.broadcast %112 : vector<2x8x1xf32> to vector<2x8x16xf32>
    %114 = arith.mulf %109, %113 : vector<2x8x16xf32>
    "tpu.trace_start"() <{level = 10 : i32, message = "bqk,bkd->bqd"}> : () -> ()
    %cst_56 = arith.constant dense<0.000000e+00> : vector<2x8x8xf32>
    %115 = tpu.matmul %114, %103, %cst_56 {dimension_numbers = #tpu.dot_dimension_numbers<[2], [1], [1], [2], [0, 0, 0, 1, 1, 2], [0], [0]>} : vector<2x8x16xf32>, vector<2x16x8xf32>, vector<2x8x8xf32> -> vector<2x8x8xf32>
    "tpu.trace_stop"() : () -> ()
    %c0_57 = arith.constant 0 : index
    %c0_58 = arith.constant 0 : index
    %c8 = arith.constant 8 : index
    %116 = vector.load %arg17[%c0_57, %c0_58, %c8] : memref<2x8x32xf32, #tpu.memory_space<vmem>>, vector<2x8x8xf32>
    tpu.vector_store %arg17[%c0_57, %c0_58, %c8], %115 {strides = array<i32>} : memref<2x8x32xf32, #tpu.memory_space<vmem>>, vector<2x8x8xf32>,
    %117 = vector.extract_strided_slice %82 {offsets = [0, 0, 16], sizes = [2, 8, 8], strides = [1, 1, 1]} : vector<2x8x32xf32> to vector<2x8x8xf32>
    %118 = vector.extract_strided_slice %83 {offsets = [0, 0, 16], sizes = [2, 16, 8], strides = [1, 1, 1]} : vector<2x16x32xf32> to vector<2x16x8xf32>
    %119 = vector.extract_strided_slice %84 {offsets = [0, 0, 16], sizes = [2, 16, 8], strides = [1, 1, 1]} : vector<2x16x32xf32> to vector<2x16x8xf32>
    "tpu.trace_start"() <{level = 10 : i32, message = "bqd,bkd->bqk"}> : () -> ()
    %cst_59 = arith.constant dense<0.000000e+00> : vector<2x8x16xf32>
    %120 = tpu.matmul %117, %118, %cst_59 {dimension_numbers = #tpu.dot_dimension_numbers<[2], [2], [1], [1], [0, 0, 0, 1, 1, 1], [0], [0]>} : vector<2x8x8xf32>, vector<2x16x8xf32>, vector<2x8x16xf32> -> vector<2x8x16xf32>
    "tpu.trace_stop"() : () -> ()
    %cst_60 = arith.constant dense<0xFF800000> : vector<2x8xf32>
    %121 = vector.multi_reduction <maximumf>, %120, %cst_60 [2] : vector<2x8x16xf32> to vector<2x8xf32>
    %122 = vector.shape_cast %121 : vector<2x8xf32> to vector<2x8x1xf32>
    %123 = vector.broadcast %122 : vector<2x8x1xf32> to vector<2x8x16xf32>
    %124 = arith.subf %120, %123 : vector<2x8x16xf32>
    %125 = math.exp %124 : vector<2x8x16xf32>
    %cst_61 = arith.constant dense<0.000000e+00> : vector<2x8xf32>
    %126 = vector.multi_reduction <add>, %125, %cst_61 [2] : vector<2x8x16xf32> to vector<2x8xf32>
    %127 = vector.shape_cast %126 : vector<2x8xf32> to vector<2x8x1xf32>
    %128 = tpu.reciprocal %127 {approx = true} : vector<2x8x1xf32> -> vector<2x8x1xf32>
    %129 = vector.broadcast %128 : vector<2x8x1xf32> to vector<2x8x16xf32>
    %130 = arith.mulf %125, %129 : vector<2x8x16xf32>
    "tpu.trace_start"() <{level = 10 : i32, message = "bqk,bkd->bqd"}> : () -> ()
    %cst_62 = arith.constant dense<0.000000e+00> : vector<2x8x8xf32>
    %131 = tpu.matmul %130, %119, %cst_62 {dimension_numbers = #tpu.dot_dimension_numbers<[2], [1], [1], [2], [0, 0, 0, 1, 1, 2], [0], [0]>} : vector<2x8x16xf32>, vector<2x16x8xf32>, vector<2x8x8xf32> -> vector<2x8x8xf32>
    "tpu.trace_stop"() : () -> ()
    %c0_63 = arith.constant 0 : index
    %c0_64 = arith.constant 0 : index
    %c16 = arith.constant 16 : index
    %132 = vector.load %arg17[%c0_63, %c0_64, %c16] : memref<2x8x32xf32, #tpu.memory_space<vmem>>, vector<2x8x8xf32>
    tpu.vector_store %arg17[%c0_63, %c0_64, %c16], %131 {strides = array<i32>} : memref<2x8x32xf32, #tpu.memory_space<vmem>>, vector<2x8x8xf32>,
    %133 = vector.extract_strided_slice %82 {offsets = [0, 0, 24], sizes = [2, 8, 8], strides = [1, 1, 1]} : vector<2x8x32xf32> to vector<2x8x8xf32>
    %134 = vector.extract_strided_slice %83 {offsets = [0, 0, 24], sizes = [2, 16, 8], strides = [1, 1, 1]} : vector<2x16x32xf32> to vector<2x16x8xf32>
    %135 = vector.extract_strided_slice %84 {offsets = [0, 0, 24], sizes = [2, 16, 8], strides = [1, 1, 1]} : vector<2x16x32xf32> to vector<2x16x8xf32>
    "tpu.trace_start"() <{level = 10 : i32, message = "bqd,bkd->bqk"}> : () -> ()
    %cst_65 = arith.constant dense<0.000000e+00> : vector<2x8x16xf32>
    %136 = tpu.matmul %133, %134, %cst_65 {dimension_numbers = #tpu.dot_dimension_numbers<[2], [2], [1], [1], [0, 0, 0, 1, 1, 1], [0], [0]>} : vector<2x8x8xf32>, vector<2x16x8xf32>, vector<2x8x16xf32> -> vector<2x8x16xf32>
    "tpu.trace_stop"() : () -> ()
    %cst_66 = arith.constant dense<0xFF800000> : vector<2x8xf32>
    %137 = vector.multi_reduction <maximumf>, %136, %cst_66 [2] : vector<2x8x16xf32> to vector<2x8xf32>
    %138 = vector.shape_cast %137 : vector<2x8xf32> to vector<2x8x1xf32>
    %139 = vector.broadcast %138 : vector<2x8x1xf32> to vector<2x8x16xf32>
    %140 = arith.subf %136, %139 : vector<2x8x16xf32>
    %141 = math.exp %140 : vector<2x8x16xf32>
    %cst_67 = arith.constant dense<0.000000e+00> : vector<2x8xf32>
    %142 = vector.multi_reduction <add>, %141, %cst_67 [2] : vector<2x8x16xf32> to vector<2x8xf32>
    %143 = vector.shape_cast %142 : vector<2x8xf32> to vector<2x8x1xf32>
    %144 = tpu.reciprocal %143 {approx = true} : vector<2x8x1xf32> -> vector<2x8x1xf32>
    %145 = vector.broadcast %144 : vector<2x8x1xf32> to vector<2x8x16xf32>
    %146 = arith.mulf %141, %145 : vector<2x8x16xf32>
    "tpu.trace_start"() <{level = 10 : i32, message = "bqk,bkd->bqd"}> : () -> ()
    %cst_68 = arith.constant dense<0.000000e+00> : vector<2x8x8xf32>
    %147 = tpu.matmul %146, %135, %cst_68 {dimension_numbers = #tpu.dot_dimension_numbers<[2], [1], [1], [2], [0, 0, 0, 1, 1, 2], [0], [0]>} : vector<2x8x16xf32>, vector<2x16x8xf32>, vector<2x8x8xf32> -> vector<2x8x8xf32>
    "tpu.trace_stop"() : () -> ()
    %c0_69 = arith.constant 0 : index
    %c0_70 = arith.constant 0 : index
    %c24 = arith.constant 24 : index
    %148 = vector.load %arg17[%c0_69, %c0_70, %c24] : memref<2x8x32xf32, #tpu.memory_space<vmem>>, vector<2x8x8xf32>
    tpu.vector_store %arg17[%c0_69, %c0_70, %c24], %147 {strides = array<i32>} : memref<2x8x32xf32, #tpu.memory_space<vmem>>, vector<2x8x8xf32>,
    %c0_71 = arith.constant 0 : index
    %c0_72 = arith.constant 0 : index
    %c0_73 = arith.constant 0 : index
    %149 = vector.load %arg17[%c0_71, %c0_72, %c0_73] : memref<2x8x32xf32, #tpu.memory_space<vmem>>, vector<2x8x32xf32>
    %150 = vector.shape_cast %149 : vector<2x8x32xf32> to vector<16x32xf32>
    %c0_74 = arith.constant 0 : index
    %c0_75 = arith.constant 0 : index
    %151 = vector.load %arg14[%c0_74, %c0_75] : memref<32x32xf32, #tpu.memory_space<vmem>>, vector<32x32xf32>
    %cst_76 = arith.constant dense<0.000000e+00> : vector<16x32xf32>
    %152 = tpu.matmul %150, %151, %cst_76 {dimension_numbers = #tpu.dot_dimension_numbers<[1], [0], [0], [1], [0, 0, 1, 1], [], []>} : vector<16x32xf32>, vector<32x32xf32>, vector<16x32xf32> -> vector<16x32xf32>
    %c0_77 = arith.constant 0 : index
    %c0_78 = arith.constant 0 : index
    %153 = vector.load %arg15[%c0_77, %c0_78] : memref<1x32xf32, #tpu.memory_space<vmem>>, vector<1x32xf32>
    %154 = vector.broadcast %153 : vector<1x32xf32> to vector<16x32xf32>
    %155 = arith.addf %152, %154 : vector<16x32xf32>
    %156 = vector.shape_cast %155 : vector<16x32xf32> to vector<2x8x32xf32>
    %c0_79 = arith.constant 0 : index
    %c0_80 = arith.constant 0 : index
    %c0_81 = arith.constant 0 : index
    %157 = vector.load %arg16[%c0_79, %c0_80, %c0_81] : memref<2x8x32xf32, #tpu.memory_space<vmem>>, vector<2x8x32xf32>
    tpu.vector_store %arg16[%c0_79, %c0_80, %c0_81], %156 {strides = array<i32>} : memref<2x8x32xf32, #tpu.memory_space<vmem>>, vector<2x8x32xf32>,
    return
  }
  func.func @transform_0(%arg0: i32) -> (i32, i32, i32) {
    %c0_i32 = arith.constant 0 : i32
    %c0_i32_0 = arith.constant 0 : i32
    %c0_i32_1 = arith.constant 0 : i32
    return %arg0, %c0_i32, %c0_i32_0 : i32, i32, i32
  }
  func.func @transform_1(%arg0: i32) -> (i32, i32, i32) {
    %c0_i32 = arith.constant 0 : i32
    %c0_i32_0 = arith.constant 0 : i32
    %c0_i32_1 = arith.constant 0 : i32
    return %arg0, %c0_i32, %c0_i32_0 : i32, i32, i32
  }
  func.func @transform_2(%arg0: i32) -> (i32, i32, i32) {
    %c0_i32 = arith.constant 0 : i32
    %c0_i32_0 = arith.constant 0 : i32
    %c0_i32_1 = arith.constant 0 : i32
    return %arg0, %c0_i32, %c0_i32_0 : i32, i32, i32
  }
  func.func @transform_3(%arg0: i32) -> (i32, i32, i32) {
    %c0_i32 = arith.constant 0 : i32
    %c0_i32_0 = arith.constant 0 : i32
    %c0_i32_1 = arith.constant 0 : i32
    return %arg0, %c0_i32, %c0_i32_0 : i32, i32, i32
  }
  func.func @transform_4(%arg0: i32) -> (i32, i32) {
    %c0_i32 = arith.constant 0 : i32
    %c0_i32_0 = arith.constant 0 : i32
    %c0_i32_1 = arith.constant 0 : i32
    return %c0_i32, %c0_i32_0 : i32, i32
  }
  func.func @transform_5(%arg0: i32) -> (i32, i32) {
    %c0_i32 = arith.constant 0 : i32
    %c0_i32_0 = arith.constant 0 : i32
    %c0_i32_1 = arith.constant 0 : i32
    return %c0_i32, %c0_i32_0 : i32, i32
  }
  func.func @transform_6(%arg0: i32) -> (i32, i32) {
    %c0_i32 = arith.constant 0 : i32
    %c0_i32_0 = arith.constant 0 : i32
    %c0_i32_1 = arith.constant 0 : i32
    return %c0_i32, %c0_i32_0 : i32, i32
  }
  func.func @transform_7(%arg0: i32) -> (i32, i32) {
    %c0_i32 = arith.constant 0 : i32
    %c0_i32_0 = arith.constant 0 : i32
    %c0_i32_1 = arith.constant 0 : i32
    return %c0_i32, %c0_i32_0 : i32, i32
  }
  func.func @transform_8(%arg0: i32) -> (i32, i32) {
    %c0_i32 = arith.constant 0 : i32
    %c0_i32_0 = arith.constant 0 : i32
    %c0_i32_1 = arith.constant 0 : i32
    return %c0_i32, %c0_i32_0 : i32, i32
  }
  func.func @transform_9(%arg0: i32) -> (i32, i32) {
    %c0_i32 = arith.constant 0 : i32
    %c0_i32_0 = arith.constant 0 : i32
    %c0_i32_1 = arith.constant 0 : i32
    return %c0_i32, %c0_i32_0 : i32, i32
  }
  func.func @transform_10(%arg0: i32) -> (i32, i32) {
    %c0_i32 = arith.constant 0 : i32
    %c0_i32_0 = arith.constant 0 : i32
    %c0_i32_1 = arith.constant 0 : i32
    return %c0_i32, %c0_i32_0 : i32, i32
  }
  func.func @transform_11(%arg0: i32) -> (i32, i32) {
    %c0_i32 = arith.constant 0 : i32
    %c0_i32_0 = arith.constant 0 : i32
    %c0_i32_1 = arith.constant 0 : i32
    return %c0_i32, %c0_i32_0 : i32, i32
  }
  func.func @transform_12(%arg0: i32) -> (i32, i32) {
    %c0_i32 = arith.constant 0 : i32
    %c0_i32_0 = arith.constant 0 : i32
    %c0_i32_1 = arith.constant 0 : i32
    return %c0_i32, %c0_i32_0 : i32, i32
  }
  func.func @transform_13(%arg0: i32) -> (i32, i32) {
    %c0_i32 = arith.constant 0 : i32
    %c0_i32_0 = arith.constant 0 : i32
    %c0_i32_1 = arith.constant 0 : i32
    return %c0_i32, %c0_i32_0 : i32, i32
  }
  func.func @transform_14(%arg0: i32) -> (i32, i32) {
    %c0_i32 = arith.constant 0 : i32
    %c0_i32_0 = arith.constant 0 : i32
    %c0_i32_1 = arith.constant 0 : i32
    return %c0_i32, %c0_i32_0 : i32, i32
  }
  func.func @transform_15(%arg0: i32) -> (i32, i32, i32) {
    %c0_i32 = arith.constant 0 : i32
    %c0_i32_0 = arith.constant 0 : i32
    %c0_i32_1 = arith.constant 0 : i32
    return %arg0, %c0_i32, %c0_i32_0 : i32, i32, i32
  }
}

</mosaic_0001>

<llo_original>
// kernel: tpu_custom_call.1
$region0: #{tpu_custom_call.1}
  #allocation0 [shape = 'u32[]', space=smem, size = 0x4, offset = 0x4, fixed_abs, tag = 'smem constant byte address 0x4 - core index']
  #allocation1 [shape = 'u32[144,128]{1,0:T(1,128)}', space=vmem, size = 0x12000, scoped, tag = 'internal scratch']
  #allocation2 [shape = 'f32[2,8,32]{2,1,0:T(8,128)}', space=vmem, size = 0x2000, scoped, tag = 'scratch operand']
  %s0 = inlined_call_operand.hbm [shape: f32[2,8,32], index: 0, kind: input, shape index: {}]
  %s1 = inlined_call_operand.hbm [shape: f32[2,16,32], index: 1, kind: input, shape index: {}]
  %s2 = inlined_call_operand.hbm [shape: f32[2,8,32], index: 2, kind: input, shape index: {}]
  %s3 = inlined_call_operand.hbm [shape: f32[2,16,32], index: 3, kind: input, shape index: {}]
  %s4 = inlined_call_operand.vmem [shape: f32[1,32], index: 4, kind: input, shape index: {}]
  %s5 = inlined_call_operand.vmem [shape: f32[1,32], index: 5, kind: input, shape index: {}]
  %s6 = inlined_call_operand.vmem [shape: f32[1,32], index: 6, kind: input, shape index: {}]
  %s7 = inlined_call_operand.vmem [shape: f32[1,32], index: 7, kind: input, shape index: {}]
  %s8 = inlined_call_operand.vmem [shape: f32[1,32], index: 8, kind: input, shape index: {}]
  %s9 = inlined_call_operand.hbm [shape: f32[1,32], index: 9, kind: input, shape index: {}]
  %s10 = inlined_call_operand.vmem [shape: f32[32,32], index: 10, kind: input, shape index: {}]
  %s11 = inlined_call_operand.hbm [shape: f32[32,32], index: 11, kind: input, shape index: {}]
  %s12 = inlined_call_operand.hbm [shape: f32[32,32], index: 12, kind: input, shape index: {}]
  %s13 = inlined_call_operand.hbm [shape: f32[32,32], index: 13, kind: input, shape index: {}]
  %s14 = inlined_call_operand.vmem [shape: f32[1,32], index: 14, kind: input, shape index: {}]
  %s15 = inlined_call_operand.hbm [shape: f32[2,8,32], index: 15, kind: output, shape index: {}]
  %s16 = sld [smem:[#allocation0]]
  $region102: #{tpu_custom_call.1} parent=0
    _
  %s18 = ssub.s32 1, %s16
  %s19 = scalar_select 0, %s18, %s16
  $region1: #{tpu_custom_call.1} parent=0
    #allocation3 [shape = 'u8[8192]{0}', space=vmem, size = 0x2000, scoped, tag = 'input window, operand 0, single buffered']
    #allocation4 [shape = 's32[1]{0}', space=sflag, size = 0x4, scoped, tag = 'scoped memory for tpu_custom_call.1']
    #allocation5 [shape = 's32[1]{0}', space=sflag, size = 0x4, scoped, tag = 'scoped memory for tpu_custom_call.1']
    #allocation6 [shape = 'u8[16384]{0}', space=vmem, size = 0x4000, scoped, tag = 'input window, operand 1, single buffered']
    #allocation7 [shape = 's32[1]{0}', space=sflag, size = 0x4, scoped, tag = 'scoped memory for tpu_custom_call.1']
    #allocation8 [shape = 'u8[8192]{0}', space=vmem, size = 0x2000, scoped, tag = 'input window, operand 2, single buffered']
    #allocation9 [shape = 'u8[16384]{0}', space=vmem, size = 0x4000, scoped, tag = 'input window, operand 3, single buffered']
    #allocation10 [shape = 's32[1]{0}', space=sflag, size = 0x4, scoped, tag = 'scoped memory for tpu_custom_call.1']
    #allocation11 [shape = 'u8[512]{0}', space=vmem, size = 0x400, scoped, tag = 'input window, operand 9, single buffered']
    #allocation12 [shape = 'u8[16384]{0}', space=vmem, size = 0x4000, scoped, tag = 'input window, operand 11, single buffered']
    #allocation13 [shape = 's32[1]{0}', space=sflag, size = 0x4, scoped, tag = 'scoped memory for tpu_custom_call.1']
    #allocation14 [shape = 'u8[16384]{0}', space=vmem, size = 0x4000, scoped, tag = 'input window, operand 12, single buffered']
    #allocation15 [shape = 'u8[16384]{0}', space=vmem, size = 0x4000, scoped, tag = 'input window, operand 13, single buffered']
    #allocation16 [shape = 's32[1]{0}', space=sflag, size = 0x4, scoped, tag = 'scoped memory for tpu_custom_call.1']
    #allocation17 [shape = 'u8[8192]{0}', space=vmem, size = 0x2000, scoped, tag = 'output window, operand 0, single buffered']
    %20 = vsyncpa [#allocation4], 0
    %21 = vsyncpa [#allocation7], 0
    %22 = vsyncpa [#allocation10], 0
    %23 = vsyncpa [#allocation13], 0
    %24 = vsyncpa [#allocation16], 0
    %25 = vsyncpa [#allocation5], 0
    // Predicated region
    $region2: #{tpu_custom_call.1} parent=1 // pred_check
      _
    $region3: #{tpu_custom_call.1} parent=1 // pred_check_branch
      %27 = sbr.rel (0) target = $region5
    $region4: #{tpu_custom_call.1} parent=1 // pred_region
      %s29 = ssub.s32 256, 256
      %30 = vsyncadd [#allocation4], %s29
      %s31 = sshll.u32 [#allocation3], 4
      %s32 = int_to_ptr.vmem [resolvable:$true] %s31
      %37 = dma.hbm_to_vmem [thread:$0]  %s0, 256, %s32, [#allocation4], 128, 128, 8
    $region5: #{tpu_custom_call.1} parent=1 // pred_fallthru
      _
    // Predicated region
    $region6: #{tpu_custom_call.1} parent=1 // pred_check
      _
    $region7: #{tpu_custom_call.1} parent=1 // pred_check_branch
      %39 = sbr.rel (0) target = $region9
    $region8: #{tpu_custom_call.1} parent=1 // pred_region
      %s41 = ssub.s32 512, 512
      %42 = vsyncadd [#allocation7], %s41
      %s43 = sshll.u32 [#allocation6], 4
      %s44 = int_to_ptr.vmem [resolvable:$true] %s43
      %49 = dma.hbm_to_vmem [thread:$0]  %s1, 512, %s44, [#allocation7], 128, 128, 8
    $region9: #{tpu_custom_call.1} parent=1 // pred_fallthru
      _
    // Predicated region
    $region10: #{tpu_custom_call.1} parent=1 // pred_check
      _
    $region11: #{tpu_custom_call.1} parent=1 // pred_check_branch
      %51 = sbr.rel (0) target = $region13
    $region12: #{tpu_custom_call.1} parent=1 // pred_region
      %s53 = ssub.s32 256, 256
      %54 = vsyncadd [#allocation7], %s53
      %s55 = sshll.u32 [#allocation8], 4
      %s56 = int_to_ptr.vmem [resolvable:$true] %s55
      %61 = dma.hbm_to_vmem [thread:$0]  %s2, 256, %s56, [#allocation7], 128, 128, 8
    $region13: #{tpu_custom_call.1} parent=1 // pred_fallthru
      _
    // Predicated region
    $region14: #{tpu_custom_call.1} parent=1 // pred_check
      _
    $region15: #{tpu_custom_call.1} parent=1 // pred_check_branch
      %63 = sbr.rel (0) target = $region17
    $region16: #{tpu_custom_call.1} parent=1 // pred_region
      %s65 = ssub.s32 512, 512
      %66 = vsyncadd [#allocation10], %s65
      %s67 = sshll.u32 [#allocation9], 4
      %s68 = int_to_ptr.vmem [resolvable:$true] %s67
      %73 = dma.hbm_to_vmem [thread:$0]  %s3, 512, %s68, [#allocation10], 128, 128, 8
    $region17: #{tpu_custom_call.1} parent=1 // pred_fallthru
      _
    // Predicated region
    $region18: #{tpu_custom_call.1} parent=1 // pred_check
      _
    $region19: #{tpu_custom_call.1} parent=1 // pred_check_branch
      %75 = sbr.rel (0) target = $region21
    $region20: #{tpu_custom_call.1} parent=1 // pred_region
      _
    $region21: #{tpu_custom_call.1} parent=1 // pred_fallthru
      _
    // Predicated region
    $region22: #{tpu_custom_call.1} parent=1 // pred_check
      _
    $region23: #{tpu_custom_call.1} parent=1 // pred_check_branch
      %77 = sbr.rel (0) target = $region25
    $region24: #{tpu_custom_call.1} parent=1 // pred_region
      _
    $region25: #{tpu_custom_call.1} parent=1 // pred_fallthru
      _
    // Predicated region
    $region26: #{tpu_custom_call.1} parent=1 // pred_check
      _
    $region27: #{tpu_custom_call.1} parent=1 // pred_check_branch
      %79 = sbr.rel (0) target = $region29
    $region28: #{tpu_custom_call.1} parent=1 // pred_region
      _
    $region29: #{tpu_custom_call.1} parent=1 // pred_fallthru
      _
    // Predicated region
    $region30: #{tpu_custom_call.1} parent=1 // pred_check
      _
    $region31: #{tpu_custom_call.1} parent=1 // pred_check_branch
      %81 = sbr.rel (0) target = $region33
    $region32: #{tpu_custom_call.1} parent=1 // pred_region
      _
    $region33: #{tpu_custom_call.1} parent=1 // pred_fallthru
      _
    // Predicated region
    $region34: #{tpu_custom_call.1} parent=1 // pred_check
      _
    $region35: #{tpu_custom_call.1} parent=1 // pred_check_branch
      %83 = sbr.rel (0) target = $region37
    $region36: #{tpu_custom_call.1} parent=1 // pred_region
      _
    $region37: #{tpu_custom_call.1} parent=1 // pred_fallthru
      _
    // Predicated region
    $region38: #{tpu_custom_call.1} parent=1 // pred_check
      _
    $region39: #{tpu_custom_call.1} parent=1 // pred_check_branch
      %85 = sbr.rel (0) target = $region41
    $region40: #{tpu_custom_call.1} parent=1 // pred_region
      %s87 = ssub.s32 16, 16
      %88 = vsyncadd [#allocation10], %s87
      %s90 = sshll.u32 [#allocation11], 4
      %s91 = int_to_ptr.vmem [resolvable:$true] %s90
      %93 = dma.hbm_to_vmem [thread:$0]  %s9, 16, %s91, [#allocation10]
    $region41: #{tpu_custom_call.1} parent=1 // pred_fallthru
      _
    // Predicated region
    $region42: #{tpu_custom_call.1} parent=1 // pred_check
      _
    $region43: #{tpu_custom_call.1} parent=1 // pred_check_branch
      %95 = sbr.rel (0) target = $region45
    $region44: #{tpu_custom_call.1} parent=1 // pred_region
      _
    $region45: #{tpu_custom_call.1} parent=1 // pred_fallthru
      _
    // Predicated region
    $region46: #{tpu_custom_call.1} parent=1 // pred_check
      _
    $region47: #{tpu_custom_call.1} parent=1 // pred_check_branch
      %97 = sbr.rel (0) target = $region49
    $region48: #{tpu_custom_call.1} parent=1 // pred_region
      %s99 = ssub.s32 512, 512
      %100 = vsyncadd [#allocation13], %s99
      %s101 = sshll.u32 [#allocation12], 4
      %s102 = int_to_ptr.vmem [resolvable:$true] %s101
      %107 = dma.hbm_to_vmem [thread:$0]  %s11, 512, %s102, [#allocation13], 128, 128, 8
    $region49: #{tpu_custom_call.1} parent=1 // pred_fallthru
      _
    // Predicated region
    $region50: #{tpu_custom_call.1} parent=1 // pred_check
      _
    $region51: #{tpu_custom_call.1} parent=1 // pred_check_branch
      %109 = sbr.rel (0) target = $region53
    $region52: #{tpu_custom_call.1} parent=1 // pred_region
      %s111 = ssub.s32 512, 512
      %112 = vsyncadd [#allocation13], %s111
      %s113 = sshll.u32 [#allocation14], 4
      %s114 = int_to_ptr.vmem [resolvable:$true] %s113
      %119 = dma.hbm_to_vmem [thread:$0]  %s12, 512, %s114, [#allocation13], 128, 128, 8
    $region53: #{tpu_custom_call.1} parent=1 // pred_fallthru
      _
    // Predicated region
    $region54: #{tpu_custom_call.1} parent=1 // pred_check
      _
    $region55: #{tpu_custom_call.1} parent=1 // pred_check_branch
      %121 = sbr.rel (0) target = $region57
    $region56: #{tpu_custom_call.1} parent=1 // pred_region
      %s123 = ssub.s32 512, 512
      %124 = vsyncadd [#allocation16], %s123
      %s125 = sshll.u32 [#allocation15], 4
      %s126 = int_to_ptr.vmem [resolvable:$true] %s125
      %131 = dma.hbm_to_vmem [thread:$0]  %s13, 512, %s126, [#allocation16], 128, 128, 8
    $region57: #{tpu_custom_call.1} parent=1 // pred_fallthru
      _
    // Predicated region
    $region58: #{tpu_custom_call.1} parent=1 // pred_check
      _
    $region59: #{tpu_custom_call.1} parent=1 // pred_check_branch
      %133 = sbr.rel (0) target = $region61
    $region60: #{tpu_custom_call.1} parent=1 // pred_region
      _
    $region61: #{tpu_custom_call.1} parent=1 // pred_fallthru
      _
    // Predicated region
    $region62: #{tpu_custom_call.1} parent=1 // pred_check
      _
    $region63: #{tpu_custom_call.1} parent=1 // pred_check_branch
      %135 = sbr.rel (0) target = $region65
    $region64: #{tpu_custom_call.1} parent=1 // pred_region
      %136 = dma.done [#allocation4], 256
    $region65: #{tpu_custom_call.1} parent=1 // pred_fallthru
      _
    // Predicated region
    $region66: #{tpu_custom_call.1} parent=1 // pred_check
      _
    $region67: #{tpu_custom_call.1} parent=1 // pred_check_branch
      %138 = sbr.rel (0) target = $region69
    $region68: #{tpu_custom_call.1} parent=1 // pred_region
      %139 = dma.done [#allocation7], 512
    $region69: #{tpu_custom_call.1} parent=1 // pred_fallthru
      _
    // Predicated region
    $region70: #{tpu_custom_call.1} parent=1 // pred_check
      _
    $region71: #{tpu_custom_call.1} parent=1 // pred_check_branch
      %141 = sbr.rel (0) target = $region73
    $region72: #{tpu_custom_call.1} parent=1 // pred_region
      %142 = dma.done [#allocation7], 256
    $region73: #{tpu_custom_call.1} parent=1 // pred_fallthru
      _
    // Predicated region
    $region74: #{tpu_custom_call.1} parent=1 // pred_check
      _
    $region75: #{tpu_custom_call.1} parent=1 // pred_check_branch
      %144 = sbr.rel (0) target = $region77
    $region76: #{tpu_custom_call.1} parent=1 // pred_region
      %145 = dma.done [#allocation10], 512
    $region77: #{tpu_custom_call.1} parent=1 // pred_fallthru
      _
    // Predicated region
    $region78: #{tpu_custom_call.1} parent=1 // pred_check
      _
    $region79: #{tpu_custom_call.1} parent=1 // pred_check_branch
      %147 = sbr.rel (0) target = $region81
    $region80: #{tpu_custom_call.1} parent=1 // pred_region
      %148 = dma.done [#allocation10], 16
    $region81: #{tpu_custom_call.1} parent=1 // pred_fallthru
      _
    // Predicated region
    $region82: #{tpu_custom_call.1} parent=1 // pred_check
      _
    $region83: #{tpu_custom_call.1} parent=1 // pred_check_branch
      %150 = sbr.rel (0) target = $region85
    $region84: #{tpu_custom_call.1} parent=1 // pred_region
      %151 = dma.done [#allocation13], 512
    $region85: #{tpu_custom_call.1} parent=1 // pred_fallthru
      _
    // Predicated region
    $region86: #{tpu_custom_call.1} parent=1 // pred_check
      _
    $region87: #{tpu_custom_call.1} parent=1 // pred_check_branch
      %153 = sbr.rel (0) target = $region89
    $region88: #{tpu_custom_call.1} parent=1 // pred_region
      %154 = dma.done [#allocation13], 512
    $region89: #{tpu_custom_call.1} parent=1 // pred_fallthru
      _
    // Predicated region
    $region90: #{tpu_custom_call.1} parent=1 // pred_check
      _
    $region91: #{tpu_custom_call.1} parent=1 // pred_check_branch
      %156 = sbr.rel (0) target = $region93
    $region92: #{tpu_custom_call.1} parent=1 // pred_region
      %157 = dma.done [#allocation16], 512
    $region93: #{tpu_custom_call.1} parent=1 // pred_fallthru
      _
    %v158 = vld [vmem:[#allocation3] sm:$0xff]
    %v159 = vld [vmem:[#allocation3 + $0x8] sm:$0xff]
    %v160 = vld [vmem:[#allocation6] sm:$0xff]
    %v161 = vld [vmem:[#allocation6 + $0x8] sm:$0xff]
    %v162 = vld [vmem:[#allocation6 + $0x10] sm:$0xff]
    %v163 = vld [vmem:[#allocation6 + $0x18] sm:$0xff]
    %v164 = vld [vmem:[#allocation8] sm:$0xff]
    %v165 = vld [vmem:[#allocation8 + $0x8] sm:$0xff]
    %v166 = vld [vmem:[#allocation9] sm:$0xff]
    %v167 = vld [vmem:[#allocation9 + $0x8] sm:$0xff]
    %v168 = vld [vmem:[#allocation9 + $0x10] sm:$0xff]
    %v169 = vld [vmem:[#allocation9 + $0x18] sm:$0xff]
    %v170 = vadd.f32 %v158, %v164
    %v171 = vadd.f32 %v159, %v165
    %v172 = vld [vmem:[%s4] sm:$0x1]
    %v173 = vld [vmem:[%s5] sm:$0x1]
    %vm174 = vcmask 261120
    %v175 = vsel %vm174, %v170, 0.0
    %176 = vadd.xlane.f32.xlu0 %v175
    %v177 = vpop.xlane.xlu0 %176
    %v178 = vsel %vm174, %v171, 0.0
    %179 = vadd.xlane.f32.xlu0 %v178
    %v180 = vpop.xlane.xlu0 %179
    %v181 = vrcp.pop 32.0
    %v182 = vmul.f32 %v177, %v181
    %v183 = vmul.f32 %v180, %v181
    %v184 = vsub.f32 %v170, %v182
    %v185 = vsub.f32 %v171, %v183
    %v186 = vmul.f32 %v184, %v184
    %v187 = vmul.f32 %v185, %v185
    %v188 = vsel %vm174, %v186, 0.0
    %189 = vadd.xlane.f32.xlu0 %v188
    %v190 = vpop.xlane.xlu0 %189
    %v191 = vsel %vm174, %v187, 0.0
    %192 = vadd.xlane.f32.xlu0 %v191
    %v193 = vpop.xlane.xlu0 %192
    %v194 = vmul.f32 %v190, %v181
    %v195 = vmul.f32 %v193, %v181
    %v196 = vadd.f32 %v194, 1e-05
    %v197 = vadd.f32 %v195, 1e-05
    %v198 = vrsqrt.pop %v196
    %v199 = vrsqrt.pop %v197
    %v200 = vmul.f32 %v184, %v198
    %v201 = vmul.f32 %v185, %v199
    %v203 = vlaneseq
    %v204 = vshrl.u32 %v203, 7
    %v205 = vsub.s32 0, %v204
    %v206 = vrot.slane %v172, %v205
    %v208 = vmul.f32 %v200, %v206
    %v209 = vmul.f32 %v201, %v206
    %v211 = vlaneseq
    %v212 = vshrl.u32 %v211, 7
    %v213 = vsub.s32 0, %v212
    %v214 = vrot.slane %v173, %v213
    %v216 = vadd.f32 %v208, %v214
    %v217 = vadd.f32 %v209, %v214
    %v218 = vadd.f32 %v160, %v166
    %v219 = vadd.f32 %v161, %v167
    %v220 = vadd.f32 %v162, %v168
    %v221 = vadd.f32 %v163, %v169
    %v222 = vld [vmem:[%s6] sm:$0x1]
    %v223 = vld [vmem:[%s7] sm:$0x1]
    %v224 = vsel %vm174, %v218, 0.0
    %225 = vadd.xlane.f32.xlu0 %v224
    %v226 = vpop.xlane.xlu0 %225
    %v227 = vsel %vm174, %v219, 0.0
    %228 = vadd.xlane.f32.xlu0 %v227
    %v229 = vpop.xlane.xlu0 %228
    %v230 = vsel %vm174, %v220, 0.0
    %231 = vadd.xlane.f32.xlu0 %v230
    %v232 = vpop.xlane.xlu0 %231
    %v233 = vsel %vm174, %v221, 0.0
    %234 = vadd.xlane.f32.xlu0 %v233
    %v235 = vpop.xlane.xlu0 %234
    %v236 = vmul.f32 %v226, %v181
    %v237 = vmul.f32 %v229, %v181
    %v238 = vmul.f32 %v232, %v181
    %v239 = vmul.f32 %v235, %v181
    %v240 = vsub.f32 %v218, %v236
    %v241 = vsub.f32 %v219, %v237
    %v242 = vsub.f32 %v220, %v238
    %v243 = vsub.f32 %v221, %v239
    %v244 = vmul.f32 %v240, %v240
    %v245 = vmul.f32 %v241, %v241
    %v246 = vmul.f32 %v242, %v242
    %v247 = vmul.f32 %v243, %v243
    %v248 = vsel %vm174, %v244, 0.0
    %249 = vadd.xlane.f32.xlu0 %v248
    %v250 = vpop.xlane.xlu0 %249
    %v251 = vsel %vm174, %v245, 0.0
    %252 = vadd.xlane.f32.xlu0 %v251
    %v253 = vpop.xlane.xlu0 %252
    %v254 = vsel %vm174, %v246, 0.0
    %255 = vadd.xlane.f32.xlu0 %v254
    %v256 = vpop.xlane.xlu0 %255
    %v257 = vsel %vm174, %v247, 0.0
    %258 = vadd.xlane.f32.xlu0 %v257
    %v259 = vpop.xlane.xlu0 %258
    %v260 = vmul.f32 %v250, %v181
    %v261 = vmul.f32 %v253, %v181
    %v262 = vmul.f32 %v256, %v181
    %v263 = vmul.f32 %v259, %v181
    %v264 = vadd.f32 %v260, 1e-05
    %v265 = vadd.f32 %v261, 1e-05
    %v266 = vadd.f32 %v262, 1e-05
    %v267 = vadd.f32 %v263, 1e-05
    %v268 = vrsqrt.pop %v264
    %v269 = vrsqrt.pop %v265
    %v270 = vrsqrt.pop %v266
    %v271 = vrsqrt.pop %v267
    %v272 = vmul.f32 %v240, %v268
    %v273 = vmul.f32 %v241, %v269
    %v274 = vmul.f32 %v242, %v270
    %v275 = vmul.f32 %v243, %v271
    %v277 = vlaneseq
    %v278 = vshrl.u32 %v277, 7
    %v279 = vsub.s32 0, %v278
    %v280 = vrot.slane %v222, %v279
    %v282 = vmul.f32 %v272, %v280
    %v283 = vmul.f32 %v273, %v280
    %v284 = vmul.f32 %v274, %v280
    %v285 = vmul.f32 %v275, %v280
    %v287 = vlaneseq
    %v288 = vshrl.u32 %v287, 7
    %v289 = vsub.s32 0, %v288
    %v290 = vrot.slane %v223, %v289
    %v292 = vadd.f32 %v282, %v290
    %v293 = vadd.f32 %v283, %v290
    %v294 = vadd.f32 %v284, %v290
    %v295 = vadd.f32 %v285, %v290
    %v296 = vld [vmem:[%s8] sm:$0x1]
    %v297 = vld [vmem:[#allocation11] sm:$0x1]
    %v298 = vsel %vm174, %v160, 0.0
    %299 = vadd.xlane.f32.xlu0 %v298
    %v300 = vpop.xlane.xlu0 %299
    %v301 = vsel %vm174, %v161, 0.0
    %302 = vadd.xlane.f32.xlu0 %v301
    %v303 = vpop.xlane.xlu0 %302
    %v304 = vsel %vm174, %v162, 0.0
    %305 = vadd.xlane.f32.xlu0 %v304
    %v306 = vpop.xlane.xlu0 %305
    %v307 = vsel %vm174, %v163, 0.0
    %308 = vadd.xlane.f32.xlu0 %v307
    %v309 = vpop.xlane.xlu0 %308
    %v310 = vmul.f32 %v300, %v181
    %v311 = vmul.f32 %v303, %v181
    %v312 = vmul.f32 %v306, %v181
    %v313 = vmul.f32 %v309, %v181
    %v314 = vsub.f32 %v160, %v310
    %v315 = vsub.f32 %v161, %v311
    %v316 = vsub.f32 %v162, %v312
    %v317 = vsub.f32 %v163, %v313
    %v318 = vmul.f32 %v314, %v314
    %v319 = vmul.f32 %v315, %v315
    %v320 = vmul.f32 %v316, %v316
    %v321 = vmul.f32 %v317, %v317
    %v322 = vsel %vm174, %v318, 0.0
    %323 = vadd.xlane.f32.xlu0 %v322
    %v324 = vpop.xlane.xlu0 %323
    %v325 = vsel %vm174, %v319, 0.0
    %326 = vadd.xlane.f32.xlu0 %v325
    %v327 = vpop.xlane.xlu0 %326
    %v328 = vsel %vm174, %v320, 0.0
    %329 = vadd.xlane.f32.xlu0 %v328
    %v330 = vpop.xlane.xlu0 %329
    %v331 = vsel %vm174, %v321, 0.0
    %332 = vadd.xlane.f32.xlu0 %v331
    %v333 = vpop.xlane.xlu0 %332
    %v334 = vmul.f32 %v324, %v181
    %v335 = vmul.f32 %v327, %v181
    %v336 = vmul.f32 %v330, %v181
    %v337 = vmul.f32 %v333, %v181
    %v338 = vadd.f32 %v334, 1e-05
    %v339 = vadd.f32 %v335, 1e-05
    %v340 = vadd.f32 %v336, 1e-05
    %v341 = vadd.f32 %v337, 1e-05
    %v342 = vrsqrt.pop %v338
    %v343 = vrsqrt.pop %v339
    %v344 = vrsqrt.pop %v340
    %v345 = vrsqrt.pop %v341
    %v346 = vmul.f32 %v314, %v342
    %v347 = vmul.f32 %v315, %v343
    %v348 = vmul.f32 %v316, %v344
    %v349 = vmul.f32 %v317, %v345
    %v351 = vlaneseq
    %v352 = vshrl.u32 %v351, 7
    %v353 = vsub.s32 0, %v352
    %v354 = vrot.slane %v296, %v353
    %v356 = vmul.f32 %v346, %v354
    %v357 = vmul.f32 %v347, %v354
    %v358 = vmul.f32 %v348, %v354
    %v359 = vmul.f32 %v349, %v354
    %v361 = vlaneseq
    %v362 = vshrl.u32 %v361, 7
    %v363 = vsub.s32 0, %v362
    %v364 = vrot.slane %v297, %v363
    %v366 = vadd.f32 %v356, %v364
    %v367 = vadd.f32 %v357, %v364
    %v368 = vadd.f32 %v358, %v364
    %v369 = vadd.f32 %v359, %v364
    %v370 = vld [vmem:[%s10] sm:$0xff]
    %v371 = vld [vmem:[%s10 + $0x8] sm:$0xff]
    %v372 = vld [vmem:[%s10 + $0x10] sm:$0xff]
    %v373 = vld [vmem:[%s10 + $0x18] sm:$0xff]
    %v375 = vsel %vm174, %v216, 0
    %v378 = vsel %vm174, %v217, 0
    %380 = vmatprep.subr.mxu0 0.0
    %381 = vmatpush1.msra.mxu0 %v370
    %382 = vmatprep.subr.mxu0 0.0
    %383 = vmatpush1.msra.mxu0 %v371
    %384 = vmatprep.subr.mxu0 0.0
    %385 = vmatpush1.msra.mxu0 %v372
    %386 = vmatprep.subr.mxu0 0.0
    %387 = vmatpush1.msra.mxu0 %v373
    %388 = vmatprep.subr.mxu0 0.0
    %389 = vmatpush1.msra.mxu0 0.0
    %390 = vmatprep.subr.mxu0 0.0
    %391 = vmatpush1.msra.mxu0 0.0
    %392 = vmatprep.subr.mxu0 0.0
    %393 = vmatpush1.msra.mxu0 0.0
    %394 = vmatprep.subr.mxu0 0.0
    %395 = vmatpush1.msra.mxu0 0.0
    %396 = vmatprep.subr.mxu0 0.0
    %397 = vmatpush1.msra.mxu0 0.0
    %398 = vmatprep.subr.mxu0 0.0
    %399 = vmatpush1.msra.mxu0 0.0
    %400 = vmatprep.subr.mxu0 0.0
    %401 = vmatpush1.msra.mxu0 0.0
    %402 = vmatprep.subr.mxu0 0.0
    %403 = vmatpush1.msra.mxu0 0.0
    %404 = vmatprep.subr.mxu0 0.0
    %405 = vmatpush1.msra.mxu0 0.0
    %406 = vmatprep.subr.mxu0 0.0
    %407 = vmatpush1.msra.mxu0 0.0
    %408 = vmatprep.subr.mxu0 0.0
    %409 = vmatpush1.msra.mxu0 0.0
    %410 = vmatprep.subr.mxu0 0.0
    %411 = vmatpush1.msra.mxu0 0.0
    %412 = vmatprep.subr.mxu0 0.0
    %413 = vmatpush1.msra.mxu0 0.0
    %414 = vmatprep.subr.mxu0 0.0
    %415 = vmatpush1.msra.mxu0 0.0
    %416 = vmatprep.subr.mxu0 0.0
    %417 = vmatpush1.msra.mxu0 0.0
    %418 = vmatprep.subr.mxu0 0.0
    %419 = vmatpush1.msra.mxu0 0.0
    %420 = vmatprep.subr.mxu0 0.0
    %421 = vmatpush1.msra.mxu0 0.0
    %422 = vmatprep.subr.mxu0 0.0
    %423 = vmatpush1.msra.mxu0 0.0
    %424 = vmatprep.subr.mxu0 0.0
    %425 = vmatpush1.msra.mxu0 0.0
    %426 = vmatprep.subr.mxu0 0.0
    %427 = vmatpush1.msra.mxu0 0.0
    %428 = vmatprep.subr.mxu0 0.0
    %429 = vmatpush1.msra.mxu0 0.0
    %430 = vmatprep.subr.mxu0 0.0
    %431 = vmatpush1.msra.mxu0 0.0
    %432 = vmatprep.subr.mxu0 0.0
    %433 = vmatpush1.msra.mxu0 0.0
    %434 = vmatprep.subr.mxu0 0.0
    %435 = vmatpush1.msra.mxu0 0.0
    %436 = vmatprep.subr.mxu0 0.0
    %437 = vmatpush1.msra.mxu0 0.0
    %438 = vmatprep.subr.mxu0 0.0
    %439 = vmatpush1.msra.mxu0 0.0
    %440 = vmatprep.subr.mxu0 0.0
    %441 = vmatpush1.msra.mxu0 0.0
    %442 = vmatprep.subr.mxu0 0.0
    %443 = vmatpush1.msra.mxu0 0.0
    %444 = vmatprep.mubr.f32.mxu0 0.0
    %445 = vmatmul.mubr.f32.gmra.mrb[0].mxu0 %v375
    %v446 = vpop.f32.mrb[0].mxu0
    %v447 = vadd.f32 0.0, %v446
    %v448 = vpop.f32.mrb[0].mxu0
    %449 = vmatprep.mubr.f32.mxu0 0.0
    %450 = vmatmul.mubr.f32.gmra.mrb[0].mxu0 %v378
    %v451 = vpop.f32.mrb[0].mxu0
    %v452 = vadd.f32 0.0, %v451
    %v453 = vpop.f32.mrb[0].mxu0
    %454 = vdwg.mxu0
    %v455 = vld [vmem:[#allocation12] sm:$0xff]
    %v456 = vld [vmem:[#allocation12 + $0x8] sm:$0xff]
    %v457 = vld [vmem:[#allocation12 + $0x10] sm:$0xff]
    %v458 = vld [vmem:[#allocation12 + $0x18] sm:$0xff]
    %v460 = vsel %vm174, %v292, 0
    %v463 = vsel %vm174, %v293, 0
    %v466 = vsel %vm174, %v294, 0
    %v469 = vsel %vm174, %v295, 0
    %471 = vmatprep.subr.mxu0 0.0
    %472 = vmatpush1.msra.mxu0 %v455
    %473 = vmatprep.subr.mxu0 0.0
    %474 = vmatpush1.msra.mxu0 %v456
    %475 = vmatprep.subr.mxu0 0.0
    %476 = vmatpush1.msra.mxu0 %v457
    %477 = vmatprep.subr.mxu0 0.0
    %478 = vmatpush1.msra.mxu0 %v458
    %479 = vmatprep.subr.mxu0 0.0
    %480 = vmatpush1.msra.mxu0 0.0
    %481 = vmatprep.subr.mxu0 0.0
    %482 = vmatpush1.msra.mxu0 0.0
    %483 = vmatprep.subr.mxu0 0.0
    %484 = vmatpush1.msra.mxu0 0.0
    %485 = vmatprep.subr.mxu0 0.0
    %486 = vmatpush1.msra.mxu0 0.0
    %487 = vmatprep.subr.mxu0 0.0
    %488 = vmatpush1.msra.mxu0 0.0
    %489 = vmatprep.subr.mxu0 0.0
    %490 = vmatpush1.msra.mxu0 0.0
    %491 = vmatprep.subr.mxu0 0.0
    %492 = vmatpush1.msra.mxu0 0.0
    %493 = vmatprep.subr.mxu0 0.0
    %494 = vmatpush1.msra.mxu0 0.0
    %495 = vmatprep.subr.mxu0 0.0
    %496 = vmatpush1.msra.mxu0 0.0
    %497 = vmatprep.subr.mxu0 0.0
    %498 = vmatpush1.msra.mxu0 0.0
    %499 = vmatprep.subr.mxu0 0.0
    %500 = vmatpush1.msra.mxu0 0.0
    %501 = vmatprep.subr.mxu0 0.0
    %502 = vmatpush1.msra.mxu0 0.0
    %503 = vmatprep.subr.mxu0 0.0
    %504 = vmatpush1.msra.mxu0 0.0
    %505 = vmatprep.subr.mxu0 0.0
    %506 = vmatpush1.msra.mxu0 0.0
    %507 = vmatprep.subr.mxu0 0.0
    %508 = vmatpush1.msra.mxu0 0.0
    %509 = vmatprep.subr.mxu0 0.0
    %510 = vmatpush1.msra.mxu0 0.0
    %511 = vmatprep.subr.mxu0 0.0
    %512 = vmatpush1.msra.mxu0 0.0
    %513 = vmatprep.subr.mxu0 0.0
    %514 = vmatpush1.msra.mxu0 0.0
    %515 = vmatprep.subr.mxu0 0.0
    %516 = vmatpush1.msra.mxu0 0.0
    %517 = vmatprep.subr.mxu0 0.0
    %518 = vmatpush1.msra.mxu0 0.0
    %519 = vmatprep.subr.mxu0 0.0
    %520 = vmatpush1.msra.mxu0 0.0
    %521 = vmatprep.subr.mxu0 0.0
    %522 = vmatpush1.msra.mxu0 0.0
    %523 = vmatprep.subr.mxu0 0.0
    %524 = vmatpush1.msra.mxu0 0.0
    %525 = vmatprep.subr.mxu0 0.0
    %526 = vmatpush1.msra.mxu0 0.0
    %527 = vmatprep.subr.mxu0 0.0
    %528 = vmatpush1.msra.mxu0 0.0
    %529 = vmatprep.subr.mxu0 0.0
    %530 = vmatpush1.msra.mxu0 0.0
    %531 = vmatprep.subr.mxu0 0.0
    %532 = vmatpush1.msra.mxu0 0.0
    %533 = vmatprep.subr.mxu0 0.0
    %534 = vmatpush1.msra.mxu0 0.0
    %535 = vmatprep.mubr.f32.mxu0 0.0
    %536 = vmatmul.mubr.f32.gmra.mrb[0].mxu0 %v460
    %v537 = vpop.f32.mrb[0].mxu0
    %v538 = vadd.f32 0.0, %v537
    %v539 = vpop.f32.mrb[0].mxu0
    %540 = vmatprep.mubr.f32.mxu0 0.0
    %541 = vmatmul.mubr.f32.gmra.mrb[0].mxu0 %v463
    %v542 = vpop.f32.mrb[0].mxu0
    %v543 = vadd.f32 0.0, %v542
    %v544 = vpop.f32.mrb[0].mxu0
    %545 = vmatprep.mubr.f32.mxu0 0.0
    %546 = vmatmul.mubr.f32.gmra.mrb[0].mxu0 %v466
    %v547 = vpop.f32.mrb[0].mxu0
    %v548 = vadd.f32 0.0, %v547
    %v549 = vpop.f32.mrb[0].mxu0
    %550 = vmatprep.mubr.f32.mxu0 0.0
    %551 = vmatmul.mubr.f32.gmra.mrb[0].mxu0 %v469
    %v552 = vpop.f32.mrb[0].mxu0
    %v553 = vadd.f32 0.0, %v552
    %v554 = vpop.f32.mrb[0].mxu0
    %555 = vdwg.mxu0
    %v556 = vld [vmem:[#allocation14] sm:$0xff]
    %v557 = vld [vmem:[#allocation14 + $0x8] sm:$0xff]
    %v558 = vld [vmem:[#allocation14 + $0x10] sm:$0xff]
    %v559 = vld [vmem:[#allocation14 + $0x18] sm:$0xff]
    %v561 = vsel %vm174, %v366, 0
    %v564 = vsel %vm174, %v367, 0
    %v567 = vsel %vm174, %v368, 0
    %v570 = vsel %vm174, %v369, 0
    %572 = vmatprep.subr.mxu0 0.0
    %573 = vmatpush1.msra.mxu0 %v556
    %574 = vmatprep.subr.mxu0 0.0
    %575 = vmatpush1.msra.mxu0 %v557
    %576 = vmatprep.subr.mxu0 0.0
    %577 = vmatpush1.msra.mxu0 %v558
    %578 = vmatprep.subr.mxu0 0.0
    %579 = vmatpush1.msra.mxu0 %v559
    %580 = vmatprep.subr.mxu0 0.0
    %581 = vmatpush1.msra.mxu0 0.0
    %582 = vmatprep.subr.mxu0 0.0
    %583 = vmatpush1.msra.mxu0 0.0
    %584 = vmatprep.subr.mxu0 0.0
    %585 = vmatpush1.msra.mxu0 0.0
    %586 = vmatprep.subr.mxu0 0.0
    %587 = vmatpush1.msra.mxu0 0.0
    %588 = vmatprep.subr.mxu0 0.0
    %589 = vmatpush1.msra.mxu0 0.0
    %590 = vmatprep.subr.mxu0 0.0
    %591 = vmatpush1.msra.mxu0 0.0
    %592 = vmatprep.subr.mxu0 0.0
    %593 = vmatpush1.msra.mxu0 0.0
    %594 = vmatprep.subr.mxu0 0.0
    %595 = vmatpush1.msra.mxu0 0.0
    %596 = vmatprep.subr.mxu0 0.0
    %597 = vmatpush1.msra.mxu0 0.0
    %598 = vmatprep.subr.mxu0 0.0
    %599 = vmatpush1.msra.mxu0 0.0
    %600 = vmatprep.subr.mxu0 0.0
    %601 = vmatpush1.msra.mxu0 0.0
    %602 = vmatprep.subr.mxu0 0.0
    %603 = vmatpush1.msra.mxu0 0.0
    %604 = vmatprep.subr.mxu0 0.0
    %605 = vmatpush1.msra.mxu0 0.0
    %606 = vmatprep.subr.mxu0 0.0
    %607 = vmatpush1.msra.mxu0 0.0
    %608 = vmatprep.subr.mxu0 0.0
    %609 = vmatpush1.msra.mxu0 0.0
    %610 = vmatprep.subr.mxu0 0.0
    %611 = vmatpush1.msra.mxu0 0.0
    %612 = vmatprep.subr.mxu0 0.0
    %613 = vmatpush1.msra.mxu0 0.0
    %614 = vmatprep.subr.mxu0 0.0
    %615 = vmatpush1.msra.mxu0 0.0
    %616 = vmatprep.subr.mxu0 0.0
    %617 = vmatpush1.msra.mxu0 0.0
    %618 = vmatprep.subr.mxu0 0.0
    %619 = vmatpush1.msra.mxu0 0.0
    %620 = vmatprep.subr.mxu0 0.0
    %621 = vmatpush1.msra.mxu0 0.0
    %622 = vmatprep.subr.mxu0 0.0
    %623 = vmatpush1.msra.mxu0 0.0
    %624 = vmatprep.subr.mxu0 0.0
    %625 = vmatpush1.msra.mxu0 0.0
    %626 = vmatprep.subr.mxu0 0.0
    %627 = vmatpush1.msra.mxu0 0.0
    %628 = vmatprep.subr.mxu0 0.0
    %629 = vmatpush1.msra.mxu0 0.0
    %630 = vmatprep.subr.mxu0 0.0
    %631 = vmatpush1.msra.mxu0 0.0
    %632 = vmatprep.subr.mxu0 0.0
    %633 = vmatpush1.msra.mxu0 0.0
    %634 = vmatprep.subr.mxu0 0.0
    %635 = vmatpush1.msra.mxu0 0.0
    %636 = vmatprep.mubr.f32.mxu0 0.0
    %637 = vmatmul.mubr.f32.gmra.mrb[0].mxu0 %v561
    %v638 = vpop.f32.mrb[0].mxu0
    %v639 = vadd.f32 0.0, %v638
    %v640 = vpop.f32.mrb[0].mxu0
    %641 = vmatprep.mubr.f32.mxu0 0.0
    %642 = vmatmul.mubr.f32.gmra.mrb[0].mxu0 %v564
    %v643 = vpop.f32.mrb[0].mxu0
    %v644 = vadd.f32 0.0, %v643
    %v645 = vpop.f32.mrb[0].mxu0
    %646 = vmatprep.mubr.f32.mxu0 0.0
    %647 = vmatmul.mubr.f32.gmra.mrb[0].mxu0 %v567
    %v648 = vpop.f32.mrb[0].mxu0
    %v649 = vadd.f32 0.0, %v648
    %v650 = vpop.f32.mrb[0].mxu0
    %651 = vmatprep.mubr.f32.mxu0 0.0
    %652 = vmatmul.mubr.f32.gmra.mrb[0].mxu0 %v570
    %v653 = vpop.f32.mrb[0].mxu0
    %v654 = vadd.f32 0.0, %v653
    %v655 = vpop.f32.mrb[0].mxu0
    %656 = vdwg.mxu0
    %vm657 = vcmask 64512
    %v659 = vsel %vm657, %v447, 0
    %v662 = vsel %vm657, %v538, 0
    %v665 = vsel %vm657, %v543, 0
    %667 = vmatprep.subr.mxu0 0.0
    %668 = vmatpush1.xpose.msra.mxu0 %v662
    %669 = vmatprep.subr.mxu0 0.0
    %670 = vmatpush1.xpose.msra.mxu0 %v665
    %671 = vmatprep.subr.mxu0 0.0
    %672 = vmatpush1.xpose.msra.mxu0 0.0
    %673 = vmatprep.subr.mxu0 0.0
    %674 = vmatpush1.xpose.msra.mxu0 0.0
    %675 = vmatprep.subr.mxu0 0.0
    %676 = vmatpush1.xpose.msra.mxu0 0.0
    %677 = vmatprep.subr.mxu0 0.0
    %678 = vmatpush1.xpose.msra.mxu0 0.0
    %679 = vmatprep.subr.mxu0 0.0
    %680 = vmatpush1.xpose.msra.mxu0 0.0
    %681 = vmatprep.subr.mxu0 0.0
    %682 = vmatpush1.xpose.msra.mxu0 0.0
    %683 = vmatprep.subr.mxu0 0.0
    %684 = vmatpush1.xpose.msra.mxu0 0.0
    %685 = vmatprep.subr.mxu0 0.0
    %686 = vmatpush1.xpose.msra.mxu0 0.0
    %687 = vmatprep.subr.mxu0 0.0
    %688 = vmatpush1.xpose.msra.mxu0 0.0
    %689 = vmatprep.subr.mxu0 0.0
    %690 = vmatpush1.xpose.msra.mxu0 0.0
    %691 = vmatprep.subr.mxu0 0.0
    %692 = vmatpush1.xpose.msra.mxu0 0.0
    %693 = vmatprep.subr.mxu0 0.0
    %694 = vmatpush1.xpose.msra.mxu0 0.0
    %695 = vmatprep.subr.mxu0 0.0
    %696 = vmatpush1.xpose.msra.mxu0 0.0
    %697 = vmatprep.subr.mxu0 0.0
    %698 = vmatpush1.xpose.msra.mxu0 0.0
    %699 = vmatprep.subr.mxu0 0.0
    %700 = vmatpush1.xpose.msra.mxu0 0.0
    %701 = vmatprep.subr.mxu0 0.0
    %702 = vmatpush1.xpose.msra.mxu0 0.0
    %703 = vmatprep.subr.mxu0 0.0
    %704 = vmatpush1.xpose.msra.mxu0 0.0
    %705 = vmatprep.subr.mxu0 0.0
    %706 = vmatpush1.xpose.msra.mxu0 0.0
    %707 = vmatprep.subr.mxu0 0.0
    %708 = vmatpush1.xpose.msra.mxu0 0.0
    %709 = vmatprep.subr.mxu0 0.0
    %710 = vmatpush1.xpose.msra.mxu0 0.0
    %711 = vmatprep.subr.mxu0 0.0
    %712 = vmatpush1.xpose.msra.mxu0 0.0
    %713 = vmatprep.subr.mxu0 0.0
    %714 = vmatpush1.xpose.msra.mxu0 0.0
    %715 = vmatprep.subr.mxu0 0.0
    %716 = vmatpush1.xpose.msra.mxu0 0.0
    %717 = vmatprep.subr.mxu0 0.0
    %718 = vmatpush1.xpose.msra.mxu0 0.0
    %719 = vmatprep.subr.mxu0 0.0
    %720 = vmatpush1.xpose.msra.mxu0 0.0
    %721 = vmatprep.subr.mxu0 0.0
    %722 = vmatpush1.xpose.msra.mxu0 0.0
    %723 = vmatprep.subr.mxu0 0.0
    %724 = vmatpush1.xpose.msra.mxu0 0.0
    %725 = vmatprep.subr.mxu0 0.0
    %726 = vmatpush1.xpose.msra.mxu0 0.0
    %727 = vmatprep.subr.mxu0 0.0
    %728 = vmatpush1.xpose.msra.mxu0 0.0
    %729 = vmatprep.subr.mxu0 0.0
    %730 = vmatpush1.xpose.msra.mxu0 0.0
    %731 = vmatprep.mubr.f32.mxu0 0.0
    %732 = vmatmul.mubr.f32.gmra.mrb[0].mxu0 %v659
    %v733 = vpop.f32.mrb[0].mxu0
    %v734 = vadd.f32 0.0, %v733
    %v735 = vpop.f32.mrb[0].mxu0
    %736 = vdwg.mxu0
    %v738 = vsel %vm657, %v452, 0
    %v741 = vsel %vm657, %v548, 0
    %v744 = vsel %vm657, %v553, 0
    %746 = vmatprep.subr.mxu0 0.0
    %747 = vmatpush1.xpose.msra.mxu0 %v741
    %748 = vmatprep.subr.mxu0 0.0
    %749 = vmatpush1.xpose.msra.mxu0 %v744
    %750 = vmatprep.subr.mxu0 0.0
    %751 = vmatpush1.xpose.msra.mxu0 0.0
    %752 = vmatprep.subr.mxu0 0.0
    %753 = vmatpush1.xpose.msra.mxu0 0.0
    %754 = vmatprep.subr.mxu0 0.0
    %755 = vmatpush1.xpose.msra.mxu0 0.0
    %756 = vmatprep.subr.mxu0 0.0
    %757 = vmatpush1.xpose.msra.mxu0 0.0
    %758 = vmatprep.subr.mxu0 0.0
    %759 = vmatpush1.xpose.msra.mxu0 0.0
    %760 = vmatprep.subr.mxu0 0.0
    %761 = vmatpush1.xpose.msra.mxu0 0.0
    %762 = vmatprep.subr.mxu0 0.0
    %763 = vmatpush1.xpose.msra.mxu0 0.0
    %764 = vmatprep.subr.mxu0 0.0
    %765 = vmatpush1.xpose.msra.mxu0 0.0
    %766 = vmatprep.subr.mxu0 0.0
    %767 = vmatpush1.xpose.msra.mxu0 0.0
    %768 = vmatprep.subr.mxu0 0.0
    %769 = vmatpush1.xpose.msra.mxu0 0.0
    %770 = vmatprep.subr.mxu0 0.0
    %771 = vmatpush1.xpose.msra.mxu0 0.0
    %772 = vmatprep.subr.mxu0 0.0
    %773 = vmatpush1.xpose.msra.mxu0 0.0
    %774 = vmatprep.subr.mxu0 0.0
    %775 = vmatpush1.xpose.msra.mxu0 0.0
    %776 = vmatprep.subr.mxu0 0.0
    %777 = vmatpush1.xpose.msra.mxu0 0.0
    %778 = vmatprep.subr.mxu0 0.0
    %779 = vmatpush1.xpose.msra.mxu0 0.0
    %780 = vmatprep.subr.mxu0 0.0
    %781 = vmatpush1.xpose.msra.mxu0 0.0
    %782 = vmatprep.subr.mxu0 0.0
    %783 = vmatpush1.xpose.msra.mxu0 0.0
    %784 = vmatprep.subr.mxu0 0.0
    %785 = vmatpush1.xpose.msra.mxu0 0.0
    %786 = vmatprep.subr.mxu0 0.0
    %787 = vmatpush1.xpose.msra.mxu0 0.0
    %788 = vmatprep.subr.mxu0 0.0
    %789 = vmatpush1.xpose.msra.mxu0 0.0
    %790 = vmatprep.subr.mxu0 0.0
    %791 = vmatpush1.xpose.msra.mxu0 0.0
    %792 = vmatprep.subr.mxu0 0.0
    %793 = vmatpush1.xpose.msra.mxu0 0.0
    %794 = vmatprep.subr.mxu0 0.0
    %795 = vmatpush1.xpose.msra.mxu0 0.0
    %796 = vmatprep.subr.mxu0 0.0
    %797 = vmatpush1.xpose.msra.mxu0 0.0
    %798 = vmatprep.subr.mxu0 0.0
    %799 = vmatpush1.xpose.msra.mxu0 0.0
    %800 = vmatprep.subr.mxu0 0.0
    %801 = vmatpush1.xpose.msra.mxu0 0.0
    %802 = vmatprep.subr.mxu0 0.0
    %803 = vmatpush1.xpose.msra.mxu0 0.0
    %804 = vmatprep.subr.mxu0 0.0
    %805 = vmatpush1.xpose.msra.mxu0 0.0
    %806 = vmatprep.subr.mxu0 0.0
    %807 = vmatpush1.xpose.msra.mxu0 0.0
    %808 = vmatprep.subr.mxu0 0.0
    %809 = vmatpush1.xpose.msra.mxu0 0.0
    %810 = vmatprep.mubr.f32.mxu0 0.0
    %811 = vmatmul.mubr.f32.gmra.mrb[0].mxu0 %v738
    %v812 = vpop.f32.mrb[0].mxu0
    %v813 = vadd.f32 0.0, %v812
    %v814 = vpop.f32.mrb[0].mxu0
    %815 = vdwg.mxu0
    %vm816 = vcmask 130048
    %v817 = vsel %vm816, %v734, -inf
    %818 = vmax.xlane.f32.xlu0 %v817
    %v819 = vpop.xlane.xlu0 %818
    %v820 = vsel %vm816, %v813, -inf
    %821 = vmax.xlane.f32.xlu0 %v820
    %v822 = vpop.xlane.xlu0 %821
    %v823 = vsub.f32 %v734, %v819
    %v824 = vsub.f32 %v813, %v822
    %v825 = vmul.f32 %v823, 1.442695
    %v826 = vpow.pop %v825
    %v827 = vmul.f32 %v824, 1.442695
    %v828 = vpow.pop %v827
    %v829 = vsel %vm816, %v826, 0.0
    %830 = vadd.xlane.f32.xlu0 %v829
    %v831 = vpop.xlane.xlu0 %830
    %v832 = vsel %vm816, %v828, 0.0
    %833 = vadd.xlane.f32.xlu0 %v832
    %v834 = vpop.xlane.xlu0 %833
    %v835 = vrcp.pop %v831
    %v836 = vrcp.pop %v834
    %v837 = vmul.f32 %v826, %v835
    %v838 = vmul.f32 %v828, %v836
    %v840 = vsel %vm816, %v837, 0
    %842 = vmatprep.subr.mxu0 0.0
    %843 = vmatpush1.msra.mxu0 %v639
    %844 = vmatprep.subr.mxu0 0.0
    %845 = vmatpush1.msra.mxu0 %v644
    %846 = vmatprep.subr.mxu0 0.0
    %847 = vmatpush1.msra.mxu0 0.0
    %848 = vmatprep.subr.mxu0 0.0
    %849 = vmatpush1.msra.mxu0 0.0
    %850 = vmatprep.subr.mxu0 0.0
    %851 = vmatpush1.msra.mxu0 0.0
    %852 = vmatprep.subr.mxu0 0.0
    %853 = vmatpush1.msra.mxu0 0.0
    %854 = vmatprep.subr.mxu0 0.0
    %855 = vmatpush1.msra.mxu0 0.0
    %856 = vmatprep.subr.mxu0 0.0
    %857 = vmatpush1.msra.mxu0 0.0
    %858 = vmatprep.subr.mxu0 0.0
    %859 = vmatpush1.msra.mxu0 0.0
    %860 = vmatprep.subr.mxu0 0.0
    %861 = vmatpush1.msra.mxu0 0.0
    %862 = vmatprep.subr.mxu0 0.0
    %863 = vmatpush1.msra.mxu0 0.0
    %864 = vmatprep.subr.mxu0 0.0
    %865 = vmatpush1.msra.mxu0 0.0
    %866 = vmatprep.subr.mxu0 0.0
    %867 = vmatpush1.msra.mxu0 0.0
    %868 = vmatprep.subr.mxu0 0.0
    %869 = vmatpush1.msra.mxu0 0.0
    %870 = vmatprep.subr.mxu0 0.0
    %871 = vmatpush1.msra.mxu0 0.0
    %872 = vmatprep.subr.mxu0 0.0
    %873 = vmatpush1.msra.mxu0 0.0
    %874 = vmatprep.subr.mxu0 0.0
    %875 = vmatpush1.msra.mxu0 0.0
    %876 = vmatprep.subr.mxu0 0.0
    %877 = vmatpush1.msra.mxu0 0.0
    %878 = vmatprep.subr.mxu0 0.0
    %879 = vmatpush1.msra.mxu0 0.0
    %880 = vmatprep.subr.mxu0 0.0
    %881 = vmatpush1.msra.mxu0 0.0
    %882 = vmatprep.subr.mxu0 0.0
    %883 = vmatpush1.msra.mxu0 0.0
    %884 = vmatprep.subr.mxu0 0.0
    %885 = vmatpush1.msra.mxu0 0.0
    %886 = vmatprep.subr.mxu0 0.0
    %887 = vmatpush1.msra.mxu0 0.0
    %888 = vmatprep.subr.mxu0 0.0
    %889 = vmatpush1.msra.mxu0 0.0
    %890 = vmatprep.subr.mxu0 0.0
    %891 = vmatpush1.msra.mxu0 0.0
    %892 = vmatprep.subr.mxu0 0.0
    %893 = vmatpush1.msra.mxu0 0.0
    %894 = vmatprep.subr.mxu0 0.0
    %895 = vmatpush1.msra.mxu0 0.0
    %896 = vmatprep.subr.mxu0 0.0
    %897 = vmatpush1.msra.mxu0 0.0
    %898 = vmatprep.subr.mxu0 0.0
    %899 = vmatpush1.msra.mxu0 0.0
    %900 = vmatprep.subr.mxu0 0.0
    %901 = vmatpush1.msra.mxu0 0.0
    %902 = vmatprep.subr.mxu0 0.0
    %903 = vmatpush1.msra.mxu0 0.0
    %904 = vmatprep.subr.mxu0 0.0
    %905 = vmatpush1.msra.mxu0 0.0
    %906 = vmatprep.mubr.f32.mxu0 0.0
    %907 = vmatmul.mubr.f32.gmra.mrb[0].mxu0 %v840
    %v908 = vpop.f32.mrb[0].mxu0
    %v909 = vadd.f32 0.0, %v908
    %v910 = vpop.f32.mrb[0].mxu0
    %911 = vdwg.mxu0
    %v913 = vsel %vm816, %v838, 0
    %915 = vmatprep.subr.mxu0 0.0
    %916 = vmatpush1.msra.mxu0 %v649
    %917 = vmatprep.subr.mxu0 0.0
    %918 = vmatpush1.msra.mxu0 %v654
    %919 = vmatprep.subr.mxu0 0.0
    %920 = vmatpush1.msra.mxu0 0.0
    %921 = vmatprep.subr.mxu0 0.0
    %922 = vmatpush1.msra.mxu0 0.0
    %923 = vmatprep.subr.mxu0 0.0
    %924 = vmatpush1.msra.mxu0 0.0
    %925 = vmatprep.subr.mxu0 0.0
    %926 = vmatpush1.msra.mxu0 0.0
    %927 = vmatprep.subr.mxu0 0.0
    %928 = vmatpush1.msra.mxu0 0.0
    %929 = vmatprep.subr.mxu0 0.0
    %930 = vmatpush1.msra.mxu0 0.0
    %931 = vmatprep.subr.mxu0 0.0
    %932 = vmatpush1.msra.mxu0 0.0
    %933 = vmatprep.subr.mxu0 0.0
    %934 = vmatpush1.msra.mxu0 0.0
    %935 = vmatprep.subr.mxu0 0.0
    %936 = vmatpush1.msra.mxu0 0.0
    %937 = vmatprep.subr.mxu0 0.0
    %938 = vmatpush1.msra.mxu0 0.0
    %939 = vmatprep.subr.mxu0 0.0
    %940 = vmatpush1.msra.mxu0 0.0
    %941 = vmatprep.subr.mxu0 0.0
    %942 = vmatpush1.msra.mxu0 0.0
    %943 = vmatprep.subr.mxu0 0.0
    %944 = vmatpush1.msra.mxu0 0.0
    %945 = vmatprep.subr.mxu0 0.0
    %946 = vmatpush1.msra.mxu0 0.0
    %947 = vmatprep.subr.mxu0 0.0
    %948 = vmatpush1.msra.mxu0 0.0
    %949 = vmatprep.subr.mxu0 0.0
    %950 = vmatpush1.msra.mxu0 0.0
    %951 = vmatprep.subr.mxu0 0.0
    %952 = vmatpush1.msra.mxu0 0.0
    %953 = vmatprep.subr.mxu0 0.0
    %954 = vmatpush1.msra.mxu0 0.0
    %955 = vmatprep.subr.mxu0 0.0
    %956 = vmatpush1.msra.mxu0 0.0
    %957 = vmatprep.subr.mxu0 0.0
    %958 = vmatpush1.msra.mxu0 0.0
    %959 = vmatprep.subr.mxu0 0.0
    %960 = vmatpush1.msra.mxu0 0.0
    %961 = vmatprep.subr.mxu0 0.0
    %962 = vmatpush1.msra.mxu0 0.0
    %963 = vmatprep.subr.mxu0 0.0
    %964 = vmatpush1.msra.mxu0 0.0
    %965 = vmatprep.subr.mxu0 0.0
    %966 = vmatpush1.msra.mxu0 0.0
    %967 = vmatprep.subr.mxu0 0.0
    %968 = vmatpush1.msra.mxu0 0.0
    %969 = vmatprep.subr.mxu0 0.0
    %970 = vmatpush1.msra.mxu0 0.0
    %971 = vmatprep.subr.mxu0 0.0
    %972 = vmatpush1.msra.mxu0 0.0
    %973 = vmatprep.subr.mxu0 0.0
    %974 = vmatpush1.msra.mxu0 0.0
    %975 = vmatprep.subr.mxu0 0.0
    %976 = vmatpush1.msra.mxu0 0.0
    %977 = vmatprep.subr.mxu0 0.0
    %978 = vmatpush1.msra.mxu0 0.0
    %979 = vmatprep.mubr.f32.mxu0 0.0
    %980 = vmatmul.mubr.f32.gmra.mrb[0].mxu0 %v913
    %v981 = vpop.f32.mrb[0].mxu0
    %v982 = vadd.f32 0.0, %v981
    %v983 = vpop.f32.mrb[0].mxu0
    %984 = vdwg.mxu0
    %985 = vst.msk [vmem:[#allocation2] sm:$0xff] %vm657, %v909
    %986 = vst.msk [vmem:[#allocation2 + $0x8] sm:$0xff] %vm657, %v982
    %987 = vrot.lane.b32.xlu0 %v447, 120
    %v988 = vpop.permute.xlu0 %987
    %989 = vrot.lane.b32.xlu0 %v538, 120
    %v990 = vpop.permute.xlu0 %989
    %991 = vrot.lane.b32.xlu0 %v543, 120
    %v992 = vpop.permute.xlu0 %991
    %v993 = vsel %vm657, %v988, 0
    %v995 = vsel %vm657, %v990, 0
    %v997 = vsel %vm657, %v992, 0
    %999 = vmatprep.subr.mxu0 0.0
    %1000 = vmatpush1.xpose.msra.mxu0 %v995
    %1001 = vmatprep.subr.mxu0 0.0
    %1002 = vmatpush1.xpose.msra.mxu0 %v997
    %1003 = vmatprep.subr.mxu0 0.0
    %1004 = vmatpush1.xpose.msra.mxu0 0.0
    %1005 = vmatprep.subr.mxu0 0.0
    %1006 = vmatpush1.xpose.msra.mxu0 0.0
    %1007 = vmatprep.subr.mxu0 0.0
    %1008 = vmatpush1.xpose.msra.mxu0 0.0
    %1009 = vmatprep.subr.mxu0 0.0
    %1010 = vmatpush1.xpose.msra.mxu0 0.0
    %1011 = vmatprep.subr.mxu0 0.0
    %1012 = vmatpush1.xpose.msra.mxu0 0.0
    %1013 = vmatprep.subr.mxu0 0.0
    %1014 = vmatpush1.xpose.msra.mxu0 0.0
    %1015 = vmatprep.subr.mxu0 0.0
    %1016 = vmatpush1.xpose.msra.mxu0 0.0
    %1017 = vmatprep.subr.mxu0 0.0
    %1018 = vmatpush1.xpose.msra.mxu0 0.0
    %1019 = vmatprep.subr.mxu0 0.0
    %1020 = vmatpush1.xpose.msra.mxu0 0.0
    %1021 = vmatprep.subr.mxu0 0.0
    %1022 = vmatpush1.xpose.msra.mxu0 0.0
    %1023 = vmatprep.subr.mxu0 0.0
    %1024 = vmatpush1.xpose.msra.mxu0 0.0
    %1025 = vmatprep.subr.mxu0 0.0
    %1026 = vmatpush1.xpose.msra.mxu0 0.0
    %1027 = vmatprep.subr.mxu0 0.0
    %1028 = vmatpush1.xpose.msra.mxu0 0.0
    %1029 = vmatprep.subr.mxu0 0.0
    %1030 = vmatpush1.xpose.msra.mxu0 0.0
    %1031 = vmatprep.subr.mxu0 0.0
    %1032 = vmatpush1.xpose.msra.mxu0 0.0
    %1033 = vmatprep.subr.mxu0 0.0
    %1034 = vmatpush1.xpose.msra.mxu0 0.0
    %1035 = vmatprep.subr.mxu0 0.0
    %1036 = vmatpush1.xpose.msra.mxu0 0.0
    %1037 = vmatprep.subr.mxu0 0.0
    %1038 = vmatpush1.xpose.msra.mxu0 0.0
    %1039 = vmatprep.subr.mxu0 0.0
    %1040 = vmatpush1.xpose.msra.mxu0 0.0
    %1041 = vmatprep.subr.mxu0 0.0
    %1042 = vmatpush1.xpose.msra.mxu0 0.0
    %1043 = vmatprep.subr.mxu0 0.0
    %1044 = vmatpush1.xpose.msra.mxu0 0.0
    %1045 = vmatprep.subr.mxu0 0.0
    %1046 = vmatpush1.xpose.msra.mxu0 0.0
    %1047 = vmatprep.subr.mxu0 0.0
    %1048 = vmatpush1.xpose.msra.mxu0 0.0
    %1049 = vmatprep.subr.mxu0 0.0
    %1050 = vmatpush1.xpose.msra.mxu0 0.0
    %1051 = vmatprep.subr.mxu0 0.0
    %1052 = vmatpush1.xpose.msra.mxu0 0.0
    %1053 = vmatprep.subr.mxu0 0.0
    %1054 = vmatpush1.xpose.msra.mxu0 0.0
    %1055 = vmatprep.subr.mxu0 0.0
    %1056 = vmatpush1.xpose.msra.mxu0 0.0
    %1057 = vmatprep.subr.mxu0 0.0
    %1058 = vmatpush1.xpose.msra.mxu0 0.0
    %1059 = vmatprep.subr.mxu0 0.0
    %1060 = vmatpush1.xpose.msra.mxu0 0.0
    %1061 = vmatprep.subr.mxu0 0.0
    %1062 = vmatpush1.xpose.msra.mxu0 0.0
    %1063 = vmatprep.mubr.f32.mxu0 0.0
    %1064 = vmatmul.mubr.f32.gmra.mrb[0].mxu0 %v993
    %v1065 = vpop.f32.mrb[0].mxu0
    %v1066 = vadd.f32 0.0, %v1065
    %v1067 = vpop.f32.mrb[0].mxu0
    %1068 = vdwg.mxu0
    %1069 = vrot.lane.b32.xlu0 %v452, 120
    %v1070 = vpop.permute.xlu0 %1069
    %1071 = vrot.lane.b32.xlu0 %v548, 120
    %v1072 = vpop.permute.xlu0 %1071
    %1073 = vrot.lane.b32.xlu0 %v553, 120
    %v1074 = vpop.permute.xlu0 %1073
    %v1075 = vsel %vm657, %v1070, 0
    %v1077 = vsel %vm657, %v1072, 0
    %v1079 = vsel %vm657, %v1074, 0
    %1081 = vmatprep.subr.mxu0 0.0
    %1082 = vmatpush1.xpose.msra.mxu0 %v1077
    %1083 = vmatprep.subr.mxu0 0.0
    %1084 = vmatpush1.xpose.msra.mxu0 %v1079
    %1085 = vmatprep.subr.mxu0 0.0
    %1086 = vmatpush1.xpose.msra.mxu0 0.0
    %1087 = vmatprep.subr.mxu0 0.0
    %1088 = vmatpush1.xpose.msra.mxu0 0.0
    %1089 = vmatprep.subr.mxu0 0.0
    %1090 = vmatpush1.xpose.msra.mxu0 0.0
    %1091 = vmatprep.subr.mxu0 0.0
    %1092 = vmatpush1.xpose.msra.mxu0 0.0
    %1093 = vmatprep.subr.mxu0 0.0
    %1094 = vmatpush1.xpose.msra.mxu0 0.0
    %1095 = vmatprep.subr.mxu0 0.0
    %1096 = vmatpush1.xpose.msra.mxu0 0.0
    %1097 = vmatprep.subr.mxu0 0.0
    %1098 = vmatpush1.xpose.msra.mxu0 0.0
    %1099 = vmatprep.subr.mxu0 0.0
    %1100 = vmatpush1.xpose.msra.mxu0 0.0
    %1101 = vmatprep.subr.mxu0 0.0
    %1102 = vmatpush1.xpose.msra.mxu0 0.0
    %1103 = vmatprep.subr.mxu0 0.0
    %1104 = vmatpush1.xpose.msra.mxu0 0.0
    %1105 = vmatprep.subr.mxu0 0.0
    %1106 = vmatpush1.xpose.msra.mxu0 0.0
    %1107 = vmatprep.subr.mxu0 0.0
    %1108 = vmatpush1.xpose.msra.mxu0 0.0
    %1109 = vmatprep.subr.mxu0 0.0
    %1110 = vmatpush1.xpose.msra.mxu0 0.0
    %1111 = vmatprep.subr.mxu0 0.0
    %1112 = vmatpush1.xpose.msra.mxu0 0.0
    %1113 = vmatprep.subr.mxu0 0.0
    %1114 = vmatpush1.xpose.msra.mxu0 0.0
    %1115 = vmatprep.subr.mxu0 0.0
    %1116 = vmatpush1.xpose.msra.mxu0 0.0
    %1117 = vmatprep.subr.mxu0 0.0
    %1118 = vmatpush1.xpose.msra.mxu0 0.0
    %1119 = vmatprep.subr.mxu0 0.0
    %1120 = vmatpush1.xpose.msra.mxu0 0.0
    %1121 = vmatprep.subr.mxu0 0.0
    %1122 = vmatpush1.xpose.msra.mxu0 0.0
    %1123 = vmatprep.subr.mxu0 0.0
    %1124 = vmatpush1.xpose.msra.mxu0 0.0
    %1125 = vmatprep.subr.mxu0 0.0
    %1126 = vmatpush1.xpose.msra.mxu0 0.0
    %1127 = vmatprep.subr.mxu0 0.0
    %1128 = vmatpush1.xpose.msra.mxu0 0.0
    %1129 = vmatprep.subr.mxu0 0.0
    %1130 = vmatpush1.xpose.msra.mxu0 0.0
    %1131 = vmatprep.subr.mxu0 0.0
    %1132 = vmatpush1.xpose.msra.mxu0 0.0
    %1133 = vmatprep.subr.mxu0 0.0
    %1134 = vmatpush1.xpose.msra.mxu0 0.0
    %1135 = vmatprep.subr.mxu0 0.0
    %1136 = vmatpush1.xpose.msra.mxu0 0.0
    %1137 = vmatprep.subr.mxu0 0.0
    %1138 = vmatpush1.xpose.msra.mxu0 0.0
    %1139 = vmatprep.subr.mxu0 0.0
    %1140 = vmatpush1.xpose.msra.mxu0 0.0
    %1141 = vmatprep.subr.mxu0 0.0
    %1142 = vmatpush1.xpose.msra.mxu0 0.0
    %1143 = vmatprep.subr.mxu0 0.0
    %1144 = vmatpush1.xpose.msra.mxu0 0.0
    %1145 = vmatprep.mubr.f32.mxu0 0.0
    %1146 = vmatmul.mubr.f32.gmra.mrb[0].mxu0 %v1075
    %v1147 = vpop.f32.mrb[0].mxu0
    %v1148 = vadd.f32 0.0, %v1147
    %v1149 = vpop.f32.mrb[0].mxu0
    %1150 = vdwg.mxu0
    %v1151 = vsel %vm816, %v1066, -inf
    %1152 = vmax.xlane.f32.xlu0 %v1151
    %v1153 = vpop.xlane.xlu0 %1152
    %v1154 = vsel %vm816, %v1148, -inf
    %1155 = vmax.xlane.f32.xlu0 %v1154
    %v1156 = vpop.xlane.xlu0 %1155
    %v1157 = vsub.f32 %v1066, %v1153
    %v1158 = vsub.f32 %v1148, %v1156
    %v1159 = vmul.f32 %v1157, 1.442695
    %v1160 = vpow.pop %v1159
    %v1161 = vmul.f32 %v1158, 1.442695
    %v1162 = vpow.pop %v1161
    %v1163 = vsel %vm816, %v1160, 0.0
    %1164 = vadd.xlane.f32.xlu0 %v1163
    %v1165 = vpop.xlane.xlu0 %1164
    %v1166 = vsel %vm816, %v1162, 0.0
    %1167 = vadd.xlane.f32.xlu0 %v1166
    %v1168 = vpop.xlane.xlu0 %1167
    %v1169 = vrcp.pop %v1165
    %v1170 = vrcp.pop %v1168
    %v1171 = vmul.f32 %v1160, %v1169
    %v1172 = vmul.f32 %v1162, %v1170
    %1175 = vrot.lane.b32.xlu0 %v639, 120
    %v1176 = vpop.permute.xlu0 %1175
    %1177 = vrot.lane.b32.xlu0 %v644, 120
    %v1178 = vpop.permute.xlu0 %1177
    %v1182 = vsel %vm816, %v1171, 0
    %1184 = vmatprep.subr.mxu0 0.0
    %1185 = vmatpush1.msra.mxu0 %v1176
    %1186 = vmatprep.subr.mxu0 0.0
    %1187 = vmatpush1.msra.mxu0 %v1178
    %1188 = vmatprep.subr.mxu0 0.0
    %1189 = vmatpush1.msra.mxu0 0.0
    %1190 = vmatprep.subr.mxu0 0.0
    %1191 = vmatpush1.msra.mxu0 0.0
    %1192 = vmatprep.subr.mxu0 0.0
    %1193 = vmatpush1.msra.mxu0 0.0
    %1194 = vmatprep.subr.mxu0 0.0
    %1195 = vmatpush1.msra.mxu0 0.0
    %1196 = vmatprep.subr.mxu0 0.0
    %1197 = vmatpush1.msra.mxu0 0.0
    %1198 = vmatprep.subr.mxu0 0.0
    %1199 = vmatpush1.msra.mxu0 0.0
    %1200 = vmatprep.subr.mxu0 0.0
    %1201 = vmatpush1.msra.mxu0 0.0
    %1202 = vmatprep.subr.mxu0 0.0
    %1203 = vmatpush1.msra.mxu0 0.0
    %1204 = vmatprep.subr.mxu0 0.0
    %1205 = vmatpush1.msra.mxu0 0.0
    %1206 = vmatprep.subr.mxu0 0.0
    %1207 = vmatpush1.msra.mxu0 0.0
    %1208 = vmatprep.subr.mxu0 0.0
    %1209 = vmatpush1.msra.mxu0 0.0
    %1210 = vmatprep.subr.mxu0 0.0
    %1211 = vmatpush1.msra.mxu0 0.0
    %1212 = vmatprep.subr.mxu0 0.0
    %1213 = vmatpush1.msra.mxu0 0.0
    %1214 = vmatprep.subr.mxu0 0.0
    %1215 = vmatpush1.msra.mxu0 0.0
    %1216 = vmatprep.subr.mxu0 0.0
    %1217 = vmatpush1.msra.mxu0 0.0
    %1218 = vmatprep.subr.mxu0 0.0
    %1219 = vmatpush1.msra.mxu0 0.0
    %1220 = vmatprep.subr.mxu0 0.0
    %1221 = vmatpush1.msra.mxu0 0.0
    %1222 = vmatprep.subr.mxu0 0.0
    %1223 = vmatpush1.msra.mxu0 0.0
    %1224 = vmatprep.subr.mxu0 0.0
    %1225 = vmatpush1.msra.mxu0 0.0
    %1226 = vmatprep.subr.mxu0 0.0
    %1227 = vmatpush1.msra.mxu0 0.0
    %1228 = vmatprep.subr.mxu0 0.0
    %1229 = vmatpush1.msra.mxu0 0.0
    %1230 = vmatprep.subr.mxu0 0.0
    %1231 = vmatpush1.msra.mxu0 0.0
    %1232 = vmatprep.subr.mxu0 0.0
    %1233 = vmatpush1.msra.mxu0 0.0
    %1234 = vmatprep.subr.mxu0 0.0
    %1235 = vmatpush1.msra.mxu0 0.0
    %1236 = vmatprep.subr.mxu0 0.0
    %1237 = vmatpush1.msra.mxu0 0.0
    %1238 = vmatprep.subr.mxu0 0.0
    %1239 = vmatpush1.msra.mxu0 0.0
    %1240 = vmatprep.subr.mxu0 0.0
    %1241 = vmatpush1.msra.mxu0 0.0
    %1242 = vmatprep.subr.mxu0 0.0
    %1243 = vmatpush1.msra.mxu0 0.0
    %1244 = vmatprep.subr.mxu0 0.0
    %1245 = vmatpush1.msra.mxu0 0.0
    %1246 = vmatprep.subr.mxu0 0.0
    %1247 = vmatpush1.msra.mxu0 0.0
    %1248 = vmatprep.mubr.f32.mxu0 0.0
    %1249 = vmatmul.mubr.f32.gmra.mrb[0].mxu0 %v1182
    %v1250 = vpop.f32.mrb[0].mxu0
    %v1251 = vadd.f32 0.0, %v1250
    %v1252 = vpop.f32.mrb[0].mxu0
    %1253 = vdwg.mxu0
    %1256 = vrot.lane.b32.xlu0 %v649, 120
    %v1257 = vpop.permute.xlu0 %1256
    %1258 = vrot.lane.b32.xlu0 %v654, 120
    %v1259 = vpop.permute.xlu0 %1258
    %v1263 = vsel %vm816, %v1172, 0
    %1265 = vmatprep.subr.mxu0 0.0
    %1266 = vmatpush1.msra.mxu0 %v1257
    %1267 = vmatprep.subr.mxu0 0.0
    %1268 = vmatpush1.msra.mxu0 %v1259
    %1269 = vmatprep.subr.mxu0 0.0
    %1270 = vmatpush1.msra.mxu0 0.0
    %1271 = vmatprep.subr.mxu0 0.0
    %1272 = vmatpush1.msra.mxu0 0.0
    %1273 = vmatprep.subr.mxu0 0.0
    %1274 = vmatpush1.msra.mxu0 0.0
    %1275 = vmatprep.subr.mxu0 0.0
    %1276 = vmatpush1.msra.mxu0 0.0
    %1277 = vmatprep.subr.mxu0 0.0
    %1278 = vmatpush1.msra.mxu0 0.0
    %1279 = vmatprep.subr.mxu0 0.0
    %1280 = vmatpush1.msra.mxu0 0.0
    %1281 = vmatprep.subr.mxu0 0.0
    %1282 = vmatpush1.msra.mxu0 0.0
    %1283 = vmatprep.subr.mxu0 0.0
    %1284 = vmatpush1.msra.mxu0 0.0
    %1285 = vmatprep.subr.mxu0 0.0
    %1286 = vmatpush1.msra.mxu0 0.0
    %1287 = vmatprep.subr.mxu0 0.0
    %1288 = vmatpush1.msra.mxu0 0.0
    %1289 = vmatprep.subr.mxu0 0.0
    %1290 = vmatpush1.msra.mxu0 0.0
    %1291 = vmatprep.subr.mxu0 0.0
    %1292 = vmatpush1.msra.mxu0 0.0
    %1293 = vmatprep.subr.mxu0 0.0
    %1294 = vmatpush1.msra.mxu0 0.0
    %1295 = vmatprep.subr.mxu0 0.0
    %1296 = vmatpush1.msra.mxu0 0.0
    %1297 = vmatprep.subr.mxu0 0.0
    %1298 = vmatpush1.msra.mxu0 0.0
    %1299 = vmatprep.subr.mxu0 0.0
    %1300 = vmatpush1.msra.mxu0 0.0
    %1301 = vmatprep.subr.mxu0 0.0
    %1302 = vmatpush1.msra.mxu0 0.0
    %1303 = vmatprep.subr.mxu0 0.0
    %1304 = vmatpush1.msra.mxu0 0.0
    %1305 = vmatprep.subr.mxu0 0.0
    %1306 = vmatpush1.msra.mxu0 0.0
    %1307 = vmatprep.subr.mxu0 0.0
    %1308 = vmatpush1.msra.mxu0 0.0
    %1309 = vmatprep.subr.mxu0 0.0
    %1310 = vmatpush1.msra.mxu0 0.0
    %1311 = vmatprep.subr.mxu0 0.0
    %1312 = vmatpush1.msra.mxu0 0.0
    %1313 = vmatprep.subr.mxu0 0.0
    %1314 = vmatpush1.msra.mxu0 0.0
    %1315 = vmatprep.subr.mxu0 0.0
    %1316 = vmatpush1.msra.mxu0 0.0
    %1317 = vmatprep.subr.mxu0 0.0
    %1318 = vmatpush1.msra.mxu0 0.0
    %1319 = vmatprep.subr.mxu0 0.0
    %1320 = vmatpush1.msra.mxu0 0.0
    %1321 = vmatprep.subr.mxu0 0.0
    %1322 = vmatpush1.msra.mxu0 0.0
    %1323 = vmatprep.subr.mxu0 0.0
    %1324 = vmatpush1.msra.mxu0 0.0
    %1325 = vmatprep.subr.mxu0 0.0
    %1326 = vmatpush1.msra.mxu0 0.0
    %1327 = vmatprep.subr.mxu0 0.0
    %1328 = vmatpush1.msra.mxu0 0.0
    %1329 = vmatprep.mubr.f32.mxu0 0.0
    %1330 = vmatmul.mubr.f32.gmra.mrb[0].mxu0 %v1263
    %v1331 = vpop.f32.mrb[0].mxu0
    %v1332 = vadd.f32 0.0, %v1331
    %v1333 = vpop.f32.mrb[0].mxu0
    %1334 = vdwg.mxu0
    %1337 = vrot.lane.b32.xlu0 %v1251, 8
    %v1338 = vpop.permute.xlu0 %1337
    %1339 = vrot.lane.b32.xlu0 %v1332, 8
    %v1340 = vpop.permute.xlu0 %1339
    %vm1343 = vcmask 130112
    %1344 = vst.msk [vmem:[#allocation2] sm:$0xff] %vm1343, %v1338
    %1345 = vst.msk [vmem:[#allocation2 + $0x8] sm:$0xff] %vm1343, %v1340
    %1346 = vrot.lane.b32.xlu0 %v447, 112
    %v1347 = vpop.permute.xlu0 %1346
    %1348 = vrot.lane.b32.xlu0 %v538, 112
    %v1349 = vpop.permute.xlu0 %1348
    %1350 = vrot.lane.b32.xlu0 %v543, 112
    %v1351 = vpop.permute.xlu0 %1350
    %v1352 = vsel %vm657, %v1347, 0
    %v1354 = vsel %vm657, %v1349, 0
    %v1356 = vsel %vm657, %v1351, 0
    %1358 = vmatprep.subr.mxu0 0.0
    %1359 = vmatpush1.xpose.msra.mxu0 %v1354
    %1360 = vmatprep.subr.mxu0 0.0
    %1361 = vmatpush1.xpose.msra.mxu0 %v1356
    %1362 = vmatprep.subr.mxu0 0.0
    %1363 = vmatpush1.xpose.msra.mxu0 0.0
    %1364 = vmatprep.subr.mxu0 0.0
    %1365 = vmatpush1.xpose.msra.mxu0 0.0
    %1366 = vmatprep.subr.mxu0 0.0
    %1367 = vmatpush1.xpose.msra.mxu0 0.0
    %1368 = vmatprep.subr.mxu0 0.0
    %1369 = vmatpush1.xpose.msra.mxu0 0.0
    %1370 = vmatprep.subr.mxu0 0.0
    %1371 = vmatpush1.xpose.msra.mxu0 0.0
    %1372 = vmatprep.subr.mxu0 0.0
    %1373 = vmatpush1.xpose.msra.mxu0 0.0
    %1374 = vmatprep.subr.mxu0 0.0
    %1375 = vmatpush1.xpose.msra.mxu0 0.0
    %1376 = vmatprep.subr.mxu0 0.0
    %1377 = vmatpush1.xpose.msra.mxu0 0.0
    %1378 = vmatprep.subr.mxu0 0.0
    %1379 = vmatpush1.xpose.msra.mxu0 0.0
    %1380 = vmatprep.subr.mxu0 0.0
    %1381 = vmatpush1.xpose.msra.mxu0 0.0
    %1382 = vmatprep.subr.mxu0 0.0
    %1383 = vmatpush1.xpose.msra.mxu0 0.0
    %1384 = vmatprep.subr.mxu0 0.0
    %1385 = vmatpush1.xpose.msra.mxu0 0.0
    %1386 = vmatprep.subr.mxu0 0.0
    %1387 = vmatpush1.xpose.msra.mxu0 0.0
    %1388 = vmatprep.subr.mxu0 0.0
    %1389 = vmatpush1.xpose.msra.mxu0 0.0
    %1390 = vmatprep.subr.mxu0 0.0
    %1391 = vmatpush1.xpose.msra.mxu0 0.0
    %1392 = vmatprep.subr.mxu0 0.0
    %1393 = vmatpush1.xpose.msra.mxu0 0.0
    %1394 = vmatprep.subr.mxu0 0.0
    %1395 = vmatpush1.xpose.msra.mxu0 0.0
    %1396 = vmatprep.subr.mxu0 0.0
    %1397 = vmatpush1.xpose.msra.mxu0 0.0
    %1398 = vmatprep.subr.mxu0 0.0
    %1399 = vmatpush1.xpose.msra.mxu0 0.0
    %1400 = vmatprep.subr.mxu0 0.0
    %1401 = vmatpush1.xpose.msra.mxu0 0.0
    %1402 = vmatprep.subr.mxu0 0.0
    %1403 = vmatpush1.xpose.msra.mxu0 0.0
    %1404 = vmatprep.subr.mxu0 0.0
    %1405 = vmatpush1.xpose.msra.mxu0 0.0
    %1406 = vmatprep.subr.mxu0 0.0
    %1407 = vmatpush1.xpose.msra.mxu0 0.0
    %1408 = vmatprep.subr.mxu0 0.0
    %1409 = vmatpush1.xpose.msra.mxu0 0.0
    %1410 = vmatprep.subr.mxu0 0.0
    %1411 = vmatpush1.xpose.msra.mxu0 0.0
    %1412 = vmatprep.subr.mxu0 0.0
    %1413 = vmatpush1.xpose.msra.mxu0 0.0
    %1414 = vmatprep.subr.mxu0 0.0
    %1415 = vmatpush1.xpose.msra.mxu0 0.0
    %1416 = vmatprep.subr.mxu0 0.0
    %1417 = vmatpush1.xpose.msra.mxu0 0.0
    %1418 = vmatprep.subr.mxu0 0.0
    %1419 = vmatpush1.xpose.msra.mxu0 0.0
    %1420 = vmatprep.subr.mxu0 0.0
    %1421 = vmatpush1.xpose.msra.mxu0 0.0
    %1422 = vmatprep.mubr.f32.mxu0 0.0
    %1423 = vmatmul.mubr.f32.gmra.mrb[0].mxu0 %v1352
    %v1424 = vpop.f32.mrb[0].mxu0
    %v1425 = vadd.f32 0.0, %v1424
    %v1426 = vpop.f32.mrb[0].mxu0
    %1427 = vdwg.mxu0
    %1428 = vrot.lane.b32.xlu0 %v452, 112
    %v1429 = vpop.permute.xlu0 %1428
    %1430 = vrot.lane.b32.xlu0 %v548, 112
    %v1431 = vpop.permute.xlu0 %1430
    %1432 = vrot.lane.b32.xlu0 %v553, 112
    %v1433 = vpop.permute.xlu0 %1432
    %v1434 = vsel %vm657, %v1429, 0
    %v1436 = vsel %vm657, %v1431, 0
    %v1438 = vsel %vm657, %v1433, 0
    %1440 = vmatprep.subr.mxu0 0.0
    %1441 = vmatpush1.xpose.msra.mxu0 %v1436
    %1442 = vmatprep.subr.mxu0 0.0
    %1443 = vmatpush1.xpose.msra.mxu0 %v1438
    %1444 = vmatprep.subr.mxu0 0.0
    %1445 = vmatpush1.xpose.msra.mxu0 0.0
    %1446 = vmatprep.subr.mxu0 0.0
    %1447 = vmatpush1.xpose.msra.mxu0 0.0
    %1448 = vmatprep.subr.mxu0 0.0
    %1449 = vmatpush1.xpose.msra.mxu0 0.0
    %1450 = vmatprep.subr.mxu0 0.0
    %1451 = vmatpush1.xpose.msra.mxu0 0.0
    %1452 = vmatprep.subr.mxu0 0.0
    %1453 = vmatpush1.xpose.msra.mxu0 0.0
    %1454 = vmatprep.subr.mxu0 0.0
    %1455 = vmatpush1.xpose.msra.mxu0 0.0
    %1456 = vmatprep.subr.mxu0 0.0
    %1457 = vmatpush1.xpose.msra.mxu0 0.0
    %1458 = vmatprep.subr.mxu0 0.0
    %1459 = vmatpush1.xpose.msra.mxu0 0.0
    %1460 = vmatprep.subr.mxu0 0.0
    %1461 = vmatpush1.xpose.msra.mxu0 0.0
    %1462 = vmatprep.subr.mxu0 0.0
    %1463 = vmatpush1.xpose.msra.mxu0 0.0
    %1464 = vmatprep.subr.mxu0 0.0
    %1465 = vmatpush1.xpose.msra.mxu0 0.0
    %1466 = vmatprep.subr.mxu0 0.0
    %1467 = vmatpush1.xpose.msra.mxu0 0.0
    %1468 = vmatprep.subr.mxu0 0.0
    %1469 = vmatpush1.xpose.msra.mxu0 0.0
    %1470 = vmatprep.subr.mxu0 0.0
    %1471 = vmatpush1.xpose.msra.mxu0 0.0
    %1472 = vmatprep.subr.mxu0 0.0
    %1473 = vmatpush1.xpose.msra.mxu0 0.0
    %1474 = vmatprep.subr.mxu0 0.0
    %1475 = vmatpush1.xpose.msra.mxu0 0.0
    %1476 = vmatprep.subr.mxu0 0.0
    %1477 = vmatpush1.xpose.msra.mxu0 0.0
    %1478 = vmatprep.subr.mxu0 0.0
    %1479 = vmatpush1.xpose.msra.mxu0 0.0
    %1480 = vmatprep.subr.mxu0 0.0
    %1481 = vmatpush1.xpose.msra.mxu0 0.0
    %1482 = vmatprep.subr.mxu0 0.0
    %1483 = vmatpush1.xpose.msra.mxu0 0.0
    %1484 = vmatprep.subr.mxu0 0.0
    %1485 = vmatpush1.xpose.msra.mxu0 0.0
    %1486 = vmatprep.subr.mxu0 0.0
    %1487 = vmatpush1.xpose.msra.mxu0 0.0
    %1488 = vmatprep.subr.mxu0 0.0
    %1489 = vmatpush1.xpose.msra.mxu0 0.0
    %1490 = vmatprep.subr.mxu0 0.0
    %1491 = vmatpush1.xpose.msra.mxu0 0.0
    %1492 = vmatprep.subr.mxu0 0.0
    %1493 = vmatpush1.xpose.msra.mxu0 0.0
    %1494 = vmatprep.subr.mxu0 0.0
    %1495 = vmatpush1.xpose.msra.mxu0 0.0
    %1496 = vmatprep.subr.mxu0 0.0
    %1497 = vmatpush1.xpose.msra.mxu0 0.0
    %1498 = vmatprep.subr.mxu0 0.0
    %1499 = vmatpush1.xpose.msra.mxu0 0.0
    %1500 = vmatprep.subr.mxu0 0.0
    %1501 = vmatpush1.xpose.msra.mxu0 0.0
    %1502 = vmatprep.subr.mxu0 0.0
    %1503 = vmatpush1.xpose.msra.mxu0 0.0
    %1504 = vmatprep.mubr.f32.mxu0 0.0
    %1505 = vmatmul.mubr.f32.gmra.mrb[0].mxu0 %v1434
    %v1506 = vpop.f32.mrb[0].mxu0
    %v1507 = vadd.f32 0.0, %v1506
    %v1508 = vpop.f32.mrb[0].mxu0
    %1509 = vdwg.mxu0
    %v1510 = vsel %vm816, %v1425, -inf
    %1511 = vmax.xlane.f32.xlu0 %v1510
    %v1512 = vpop.xlane.xlu0 %1511
    %v1513 = vsel %vm816, %v1507, -inf
    %1514 = vmax.xlane.f32.xlu0 %v1513
    %v1515 = vpop.xlane.xlu0 %1514
    %v1516 = vsub.f32 %v1425, %v1512
    %v1517 = vsub.f32 %v1507, %v1515
    %v1518 = vmul.f32 %v1516, 1.442695
    %v1519 = vpow.pop %v1518
    %v1520 = vmul.f32 %v1517, 1.442695
    %v1521 = vpow.pop %v1520
    %v1522 = vsel %vm816, %v1519, 0.0
    %1523 = vadd.xlane.f32.xlu0 %v1522
    %v1524 = vpop.xlane.xlu0 %1523
    %v1525 = vsel %vm816, %v1521, 0.0
    %1526 = vadd.xlane.f32.xlu0 %v1525
    %v1527 = vpop.xlane.xlu0 %1526
    %v1528 = vrcp.pop %v1524
    %v1529 = vrcp.pop %v1527
    %v1530 = vmul.f32 %v1519, %v1528
    %v1531 = vmul.f32 %v1521, %v1529
    %1532 = vrot.lane.b32.xlu0 %v639, 112
    %v1533 = vpop.permute.xlu0 %1532
    %1534 = vrot.lane.b32.xlu0 %v644, 112
    %v1535 = vpop.permute.xlu0 %1534
    %v1539 = vsel %vm816, %v1530, 0
    %1541 = vmatprep.subr.mxu0 0.0
    %1542 = vmatpush1.msra.mxu0 %v1533
    %1543 = vmatprep.subr.mxu0 0.0
    %1544 = vmatpush1.msra.mxu0 %v1535
    %1545 = vmatprep.subr.mxu0 0.0
    %1546 = vmatpush1.msra.mxu0 0.0
    %1547 = vmatprep.subr.mxu0 0.0
    %1548 = vmatpush1.msra.mxu0 0.0
    %1549 = vmatprep.subr.mxu0 0.0
    %1550 = vmatpush1.msra.mxu0 0.0
    %1551 = vmatprep.subr.mxu0 0.0
    %1552 = vmatpush1.msra.mxu0 0.0
    %1553 = vmatprep.subr.mxu0 0.0
    %1554 = vmatpush1.msra.mxu0 0.0
    %1555 = vmatprep.subr.mxu0 0.0
    %1556 = vmatpush1.msra.mxu0 0.0
    %1557 = vmatprep.subr.mxu0 0.0
    %1558 = vmatpush1.msra.mxu0 0.0
    %1559 = vmatprep.subr.mxu0 0.0
    %1560 = vmatpush1.msra.mxu0 0.0
    %1561 = vmatprep.subr.mxu0 0.0
    %1562 = vmatpush1.msra.mxu0 0.0
    %1563 = vmatprep.subr.mxu0 0.0
    %1564 = vmatpush1.msra.mxu0 0.0
    %1565 = vmatprep.subr.mxu0 0.0
    %1566 = vmatpush1.msra.mxu0 0.0
    %1567 = vmatprep.subr.mxu0 0.0
    %1568 = vmatpush1.msra.mxu0 0.0
    %1569 = vmatprep.subr.mxu0 0.0
    %1570 = vmatpush1.msra.mxu0 0.0
    %1571 = vmatprep.subr.mxu0 0.0
    %1572 = vmatpush1.msra.mxu0 0.0
    %1573 = vmatprep.subr.mxu0 0.0
    %1574 = vmatpush1.msra.mxu0 0.0
    %1575 = vmatprep.subr.mxu0 0.0
    %1576 = vmatpush1.msra.mxu0 0.0
    %1577 = vmatprep.subr.mxu0 0.0
    %1578 = vmatpush1.msra.mxu0 0.0
    %1579 = vmatprep.subr.mxu0 0.0
    %1580 = vmatpush1.msra.mxu0 0.0
    %1581 = vmatprep.subr.mxu0 0.0
    %1582 = vmatpush1.msra.mxu0 0.0
    %1583 = vmatprep.subr.mxu0 0.0
    %1584 = vmatpush1.msra.mxu0 0.0
    %1585 = vmatprep.subr.mxu0 0.0
    %1586 = vmatpush1.msra.mxu0 0.0
    %1587 = vmatprep.subr.mxu0 0.0
    %1588 = vmatpush1.msra.mxu0 0.0
    %1589 = vmatprep.subr.mxu0 0.0
    %1590 = vmatpush1.msra.mxu0 0.0
    %1591 = vmatprep.subr.mxu0 0.0
    %1592 = vmatpush1.msra.mxu0 0.0
    %1593 = vmatprep.subr.mxu0 0.0
    %1594 = vmatpush1.msra.mxu0 0.0
    %1595 = vmatprep.subr.mxu0 0.0
    %1596 = vmatpush1.msra.mxu0 0.0
    %1597 = vmatprep.subr.mxu0 0.0
    %1598 = vmatpush1.msra.mxu0 0.0
    %1599 = vmatprep.subr.mxu0 0.0
    %1600 = vmatpush1.msra.mxu0 0.0
    %1601 = vmatprep.subr.mxu0 0.0
    %1602 = vmatpush1.msra.mxu0 0.0
    %1603 = vmatprep.subr.mxu0 0.0
    %1604 = vmatpush1.msra.mxu0 0.0
    %1605 = vmatprep.mubr.f32.mxu0 0.0
    %1606 = vmatmul.mubr.f32.gmra.mrb[0].mxu0 %v1539
    %v1607 = vpop.f32.mrb[0].mxu0
    %v1608 = vadd.f32 0.0, %v1607
    %v1609 = vpop.f32.mrb[0].mxu0
    %1610 = vdwg.mxu0
    %1611 = vrot.lane.b32.xlu0 %v649, 112
    %v1612 = vpop.permute.xlu0 %1611
    %1613 = vrot.lane.b32.xlu0 %v654, 112
    %v1614 = vpop.permute.xlu0 %1613
    %v1618 = vsel %vm816, %v1531, 0
    %1620 = vmatprep.subr.mxu0 0.0
    %1621 = vmatpush1.msra.mxu0 %v1612
    %1622 = vmatprep.subr.mxu0 0.0
    %1623 = vmatpush1.msra.mxu0 %v1614
    %1624 = vmatprep.subr.mxu0 0.0
    %1625 = vmatpush1.msra.mxu0 0.0
    %1626 = vmatprep.subr.mxu0 0.0
    %1627 = vmatpush1.msra.mxu0 0.0
    %1628 = vmatprep.subr.mxu0 0.0
    %1629 = vmatpush1.msra.mxu0 0.0
    %1630 = vmatprep.subr.mxu0 0.0
    %1631 = vmatpush1.msra.mxu0 0.0
    %1632 = vmatprep.subr.mxu0 0.0
    %1633 = vmatpush1.msra.mxu0 0.0
    %1634 = vmatprep.subr.mxu0 0.0
    %1635 = vmatpush1.msra.mxu0 0.0
    %1636 = vmatprep.subr.mxu0 0.0
    %1637 = vmatpush1.msra.mxu0 0.0
    %1638 = vmatprep.subr.mxu0 0.0
    %1639 = vmatpush1.msra.mxu0 0.0
    %1640 = vmatprep.subr.mxu0 0.0
    %1641 = vmatpush1.msra.mxu0 0.0
    %1642 = vmatprep.subr.mxu0 0.0
    %1643 = vmatpush1.msra.mxu0 0.0
    %1644 = vmatprep.subr.mxu0 0.0
    %1645 = vmatpush1.msra.mxu0 0.0
    %1646 = vmatprep.subr.mxu0 0.0
    %1647 = vmatpush1.msra.mxu0 0.0
    %1648 = vmatprep.subr.mxu0 0.0
    %1649 = vmatpush1.msra.mxu0 0.0
    %1650 = vmatprep.subr.mxu0 0.0
    %1651 = vmatpush1.msra.mxu0 0.0
    %1652 = vmatprep.subr.mxu0 0.0
    %1653 = vmatpush1.msra.mxu0 0.0
    %1654 = vmatprep.subr.mxu0 0.0
    %1655 = vmatpush1.msra.mxu0 0.0
    %1656 = vmatprep.subr.mxu0 0.0
    %1657 = vmatpush1.msra.mxu0 0.0
    %1658 = vmatprep.subr.mxu0 0.0
    %1659 = vmatpush1.msra.mxu0 0.0
    %1660 = vmatprep.subr.mxu0 0.0
    %1661 = vmatpush1.msra.mxu0 0.0
    %1662 = vmatprep.subr.mxu0 0.0
    %1663 = vmatpush1.msra.mxu0 0.0
    %1664 = vmatprep.subr.mxu0 0.0
    %1665 = vmatpush1.msra.mxu0 0.0
    %1666 = vmatprep.subr.mxu0 0.0
    %1667 = vmatpush1.msra.mxu0 0.0
    %1668 = vmatprep.subr.mxu0 0.0
    %1669 = vmatpush1.msra.mxu0 0.0
    %1670 = vmatprep.subr.mxu0 0.0
    %1671 = vmatpush1.msra.mxu0 0.0
    %1672 = vmatprep.subr.mxu0 0.0
    %1673 = vmatpush1.msra.mxu0 0.0
    %1674 = vmatprep.subr.mxu0 0.0
    %1675 = vmatpush1.msra.mxu0 0.0
    %1676 = vmatprep.subr.mxu0 0.0
    %1677 = vmatpush1.msra.mxu0 0.0
    %1678 = vmatprep.subr.mxu0 0.0
    %1679 = vmatpush1.msra.mxu0 0.0
    %1680 = vmatprep.subr.mxu0 0.0
    %1681 = vmatpush1.msra.mxu0 0.0
    %1682 = vmatprep.subr.mxu0 0.0
    %1683 = vmatpush1.msra.mxu0 0.0
    %1684 = vmatprep.mubr.f32.mxu0 0.0
    %1685 = vmatmul.mubr.f32.gmra.mrb[0].mxu0 %v1618
    %v1686 = vpop.f32.mrb[0].mxu0
    %v1687 = vadd.f32 0.0, %v1686
    %v1688 = vpop.f32.mrb[0].mxu0
    %1689 = vdwg.mxu0
    %1692 = vrot.lane.b32.xlu0 %v1608, 16
    %v1693 = vpop.permute.xlu0 %1692
    %1694 = vrot.lane.b32.xlu0 %v1687, 16
    %v1695 = vpop.permute.xlu0 %1694
    %vm1698 = vcmask 195712
    %1699 = vst.msk [vmem:[#allocation2] sm:$0xff] %vm1698, %v1693
    %1700 = vst.msk [vmem:[#allocation2 + $0x8] sm:$0xff] %vm1698, %v1695
    %1701 = vrot.lane.b32.xlu0 %v447, 104
    %v1702 = vpop.permute.xlu0 %1701
    %1703 = vrot.lane.b32.xlu0 %v538, 104
    %v1704 = vpop.permute.xlu0 %1703
    %1705 = vrot.lane.b32.xlu0 %v543, 104
    %v1706 = vpop.permute.xlu0 %1705
    %v1707 = vsel %vm657, %v1702, 0
    %v1709 = vsel %vm657, %v1704, 0
    %v1711 = vsel %vm657, %v1706, 0
    %1713 = vmatprep.subr.mxu0 0.0
    %1714 = vmatpush1.xpose.msra.mxu0 %v1709
    %1715 = vmatprep.subr.mxu0 0.0
    %1716 = vmatpush1.xpose.msra.mxu0 %v1711
    %1717 = vmatprep.subr.mxu0 0.0
    %1718 = vmatpush1.xpose.msra.mxu0 0.0
    %1719 = vmatprep.subr.mxu0 0.0
    %1720 = vmatpush1.xpose.msra.mxu0 0.0
    %1721 = vmatprep.subr.mxu0 0.0
    %1722 = vmatpush1.xpose.msra.mxu0 0.0
    %1723 = vmatprep.subr.mxu0 0.0
    %1724 = vmatpush1.xpose.msra.mxu0 0.0
    %1725 = vmatprep.subr.mxu0 0.0
    %1726 = vmatpush1.xpose.msra.mxu0 0.0
    %1727 = vmatprep.subr.mxu0 0.0
    %1728 = vmatpush1.xpose.msra.mxu0 0.0
    %1729 = vmatprep.subr.mxu0 0.0
    %1730 = vmatpush1.xpose.msra.mxu0 0.0
    %1731 = vmatprep.subr.mxu0 0.0
    %1732 = vmatpush1.xpose.msra.mxu0 0.0
    %1733 = vmatprep.subr.mxu0 0.0
    %1734 = vmatpush1.xpose.msra.mxu0 0.0
    %1735 = vmatprep.subr.mxu0 0.0
    %1736 = vmatpush1.xpose.msra.mxu0 0.0
    %1737 = vmatprep.subr.mxu0 0.0
    %1738 = vmatpush1.xpose.msra.mxu0 0.0
    %1739 = vmatprep.subr.mxu0 0.0
    %1740 = vmatpush1.xpose.msra.mxu0 0.0
    %1741 = vmatprep.subr.mxu0 0.0
    %1742 = vmatpush1.xpose.msra.mxu0 0.0
    %1743 = vmatprep.subr.mxu0 0.0
    %1744 = vmatpush1.xpose.msra.mxu0 0.0
    %1745 = vmatprep.subr.mxu0 0.0
    %1746 = vmatpush1.xpose.msra.mxu0 0.0
    %1747 = vmatprep.subr.mxu0 0.0
    %1748 = vmatpush1.xpose.msra.mxu0 0.0
    %1749 = vmatprep.subr.mxu0 0.0
    %1750 = vmatpush1.xpose.msra.mxu0 0.0
    %1751 = vmatprep.subr.mxu0 0.0
    %1752 = vmatpush1.xpose.msra.mxu0 0.0
    %1753 = vmatprep.subr.mxu0 0.0
    %1754 = vmatpush1.xpose.msra.mxu0 0.0
    %1755 = vmatprep.subr.mxu0 0.0
    %1756 = vmatpush1.xpose.msra.mxu0 0.0
    %1757 = vmatprep.subr.mxu0 0.0
    %1758 = vmatpush1.xpose.msra.mxu0 0.0
    %1759 = vmatprep.subr.mxu0 0.0
    %1760 = vmatpush1.xpose.msra.mxu0 0.0
    %1761 = vmatprep.subr.mxu0 0.0
    %1762 = vmatpush1.xpose.msra.mxu0 0.0
    %1763 = vmatprep.subr.mxu0 0.0
    %1764 = vmatpush1.xpose.msra.mxu0 0.0
    %1765 = vmatprep.subr.mxu0 0.0
    %1766 = vmatpush1.xpose.msra.mxu0 0.0
    %1767 = vmatprep.subr.mxu0 0.0
    %1768 = vmatpush1.xpose.msra.mxu0 0.0
    %1769 = vmatprep.subr.mxu0 0.0
    %1770 = vmatpush1.xpose.msra.mxu0 0.0
    %1771 = vmatprep.subr.mxu0 0.0
    %1772 = vmatpush1.xpose.msra.mxu0 0.0
    %1773 = vmatprep.subr.mxu0 0.0
    %1774 = vmatpush1.xpose.msra.mxu0 0.0
    %1775 = vmatprep.subr.mxu0 0.0
    %1776 = vmatpush1.xpose.msra.mxu0 0.0
    %1777 = vmatprep.mubr.f32.mxu0 0.0
    %1778 = vmatmul.mubr.f32.gmra.mrb[0].mxu0 %v1707
    %v1779 = vpop.f32.mrb[0].mxu0
    %v1780 = vadd.f32 0.0, %v1779
    %v1781 = vpop.f32.mrb[0].mxu0
    %1782 = vdwg.mxu0
    %1783 = vrot.lane.b32.xlu0 %v452, 104
    %v1784 = vpop.permute.xlu0 %1783
    %1785 = vrot.lane.b32.xlu0 %v548, 104
    %v1786 = vpop.permute.xlu0 %1785
    %1787 = vrot.lane.b32.xlu0 %v553, 104
    %v1788 = vpop.permute.xlu0 %1787
    %v1789 = vsel %vm657, %v1784, 0
    %v1791 = vsel %vm657, %v1786, 0
    %v1793 = vsel %vm657, %v1788, 0
    %1795 = vmatprep.subr.mxu0 0.0
    %1796 = vmatpush1.xpose.msra.mxu0 %v1791
    %1797 = vmatprep.subr.mxu0 0.0
    %1798 = vmatpush1.xpose.msra.mxu0 %v1793
    %1799 = vmatprep.subr.mxu0 0.0
    %1800 = vmatpush1.xpose.msra.mxu0 0.0
    %1801 = vmatprep.subr.mxu0 0.0
    %1802 = vmatpush1.xpose.msra.mxu0 0.0
    %1803 = vmatprep.subr.mxu0 0.0
    %1804 = vmatpush1.xpose.msra.mxu0 0.0
    %1805 = vmatprep.subr.mxu0 0.0
    %1806 = vmatpush1.xpose.msra.mxu0 0.0
    %1807 = vmatprep.subr.mxu0 0.0
    %1808 = vmatpush1.xpose.msra.mxu0 0.0
    %1809 = vmatprep.subr.mxu0 0.0
    %1810 = vmatpush1.xpose.msra.mxu0 0.0
    %1811 = vmatprep.subr.mxu0 0.0
    %1812 = vmatpush1.xpose.msra.mxu0 0.0
    %1813 = vmatprep.subr.mxu0 0.0
    %1814 = vmatpush1.xpose.msra.mxu0 0.0
    %1815 = vmatprep.subr.mxu0 0.0
    %1816 = vmatpush1.xpose.msra.mxu0 0.0
    %1817 = vmatprep.subr.mxu0 0.0
    %1818 = vmatpush1.xpose.msra.mxu0 0.0
    %1819 = vmatprep.subr.mxu0 0.0
    %1820 = vmatpush1.xpose.msra.mxu0 0.0
    %1821 = vmatprep.subr.mxu0 0.0
    %1822 = vmatpush1.xpose.msra.mxu0 0.0
    %1823 = vmatprep.subr.mxu0 0.0
    %1824 = vmatpush1.xpose.msra.mxu0 0.0
    %1825 = vmatprep.subr.mxu0 0.0
    %1826 = vmatpush1.xpose.msra.mxu0 0.0
    %1827 = vmatprep.subr.mxu0 0.0
    %1828 = vmatpush1.xpose.msra.mxu0 0.0
    %1829 = vmatprep.subr.mxu0 0.0
    %1830 = vmatpush1.xpose.msra.mxu0 0.0
    %1831 = vmatprep.subr.mxu0 0.0
    %1832 = vmatpush1.xpose.msra.mxu0 0.0
    %1833 = vmatprep.subr.mxu0 0.0
    %1834 = vmatpush1.xpose.msra.mxu0 0.0
    %1835 = vmatprep.subr.mxu0 0.0
    %1836 = vmatpush1.xpose.msra.mxu0 0.0
    %1837 = vmatprep.subr.mxu0 0.0
    %1838 = vmatpush1.xpose.msra.mxu0 0.0
    %1839 = vmatprep.subr.mxu0 0.0
    %1840 = vmatpush1.xpose.msra.mxu0 0.0
    %1841 = vmatprep.subr.mxu0 0.0
    %1842 = vmatpush1.xpose.msra.mxu0 0.0
    %1843 = vmatprep.subr.mxu0 0.0
    %1844 = vmatpush1.xpose.msra.mxu0 0.0
    %1845 = vmatprep.subr.mxu0 0.0
    %1846 = vmatpush1.xpose.msra.mxu0 0.0
    %1847 = vmatprep.subr.mxu0 0.0
    %1848 = vmatpush1.xpose.msra.mxu0 0.0
    %1849 = vmatprep.subr.mxu0 0.0
    %1850 = vmatpush1.xpose.msra.mxu0 0.0
    %1851 = vmatprep.subr.mxu0 0.0
    %1852 = vmatpush1.xpose.msra.mxu0 0.0
    %1853 = vmatprep.subr.mxu0 0.0
    %1854 = vmatpush1.xpose.msra.mxu0 0.0
    %1855 = vmatprep.subr.mxu0 0.0
    %1856 = vmatpush1.xpose.msra.mxu0 0.0
    %1857 = vmatprep.subr.mxu0 0.0
    %1858 = vmatpush1.xpose.msra.mxu0 0.0
    %1859 = vmatprep.mubr.f32.mxu0 0.0
    %1860 = vmatmul.mubr.f32.gmra.mrb[0].mxu0 %v1789
    %v1861 = vpop.f32.mrb[0].mxu0
    %v1862 = vadd.f32 0.0, %v1861
    %v1863 = vpop.f32.mrb[0].mxu0
    %1864 = vdwg.mxu0
    %v1865 = vsel %vm816, %v1780, -inf
    %1866 = vmax.xlane.f32.xlu0 %v1865
    %v1867 = vpop.xlane.xlu0 %1866
    %v1868 = vsel %vm816, %v1862, -inf
    %1869 = vmax.xlane.f32.xlu0 %v1868
    %v1870 = vpop.xlane.xlu0 %1869
    %v1871 = vsub.f32 %v1780, %v1867
    %v1872 = vsub.f32 %v1862, %v1870
    %v1873 = vmul.f32 %v1871, 1.442695
    %v1874 = vpow.pop %v1873
    %v1875 = vmul.f32 %v1872, 1.442695
    %v1876 = vpow.pop %v1875
    %v1877 = vsel %vm816, %v1874, 0.0
    %1878 = vadd.xlane.f32.xlu0 %v1877
    %v1879 = vpop.xlane.xlu0 %1878
    %v1880 = vsel %vm816, %v1876, 0.0
    %1881 = vadd.xlane.f32.xlu0 %v1880
    %v1882 = vpop.xlane.xlu0 %1881
    %v1883 = vrcp.pop %v1879
    %v1884 = vrcp.pop %v1882
    %v1885 = vmul.f32 %v1874, %v1883
    %v1886 = vmul.f32 %v1876, %v1884
    %1887 = vrot.lane.b32.xlu0 %v639, 104
    %v1888 = vpop.permute.xlu0 %1887
    %1889 = vrot.lane.b32.xlu0 %v644, 104
    %v1890 = vpop.permute.xlu0 %1889
    %v1894 = vsel %vm816, %v1885, 0
    %1896 = vmatprep.subr.mxu0 0.0
    %1897 = vmatpush1.msra.mxu0 %v1888
    %1898 = vmatprep.subr.mxu0 0.0
    %1899 = vmatpush1.msra.mxu0 %v1890
    %1900 = vmatprep.subr.mxu0 0.0
    %1901 = vmatpush1.msra.mxu0 0.0
    %1902 = vmatprep.subr.mxu0 0.0
    %1903 = vmatpush1.msra.mxu0 0.0
    %1904 = vmatprep.subr.mxu0 0.0
    %1905 = vmatpush1.msra.mxu0 0.0
    %1906 = vmatprep.subr.mxu0 0.0
    %1907 = vmatpush1.msra.mxu0 0.0
    %1908 = vmatprep.subr.mxu0 0.0
    %1909 = vmatpush1.msra.mxu0 0.0
    %1910 = vmatprep.subr.mxu0 0.0
    %1911 = vmatpush1.msra.mxu0 0.0
    %1912 = vmatprep.subr.mxu0 0.0
    %1913 = vmatpush1.msra.mxu0 0.0
    %1914 = vmatprep.subr.mxu0 0.0
    %1915 = vmatpush1.msra.mxu0 0.0
    %1916 = vmatprep.subr.mxu0 0.0
    %1917 = vmatpush1.msra.mxu0 0.0
    %1918 = vmatprep.subr.mxu0 0.0
    %1919 = vmatpush1.msra.mxu0 0.0
    %1920 = vmatprep.subr.mxu0 0.0
    %1921 = vmatpush1.msra.mxu0 0.0
    %1922 = vmatprep.subr.mxu0 0.0
    %1923 = vmatpush1.msra.mxu0 0.0
    %1924 = vmatprep.subr.mxu0 0.0
    %1925 = vmatpush1.msra.mxu0 0.0
    %1926 = vmatprep.subr.mxu0 0.0
    %1927 = vmatpush1.msra.mxu0 0.0
    %1928 = vmatprep.subr.mxu0 0.0
    %1929 = vmatpush1.msra.mxu0 0.0
    %1930 = vmatprep.subr.mxu0 0.0
    %1931 = vmatpush1.msra.mxu0 0.0
    %1932 = vmatprep.subr.mxu0 0.0
    %1933 = vmatpush1.msra.mxu0 0.0
    %1934 = vmatprep.subr.mxu0 0.0
    %1935 = vmatpush1.msra.mxu0 0.0
    %1936 = vmatprep.subr.mxu0 0.0
    %1937 = vmatpush1.msra.mxu0 0.0
    %1938 = vmatprep.subr.mxu0 0.0
    %1939 = vmatpush1.msra.mxu0 0.0
    %1940 = vmatprep.subr.mxu0 0.0
    %1941 = vmatpush1.msra.mxu0 0.0
    %1942 = vmatprep.subr.mxu0 0.0
    %1943 = vmatpush1.msra.mxu0 0.0
    %1944 = vmatprep.subr.mxu0 0.0
    %1945 = vmatpush1.msra.mxu0 0.0
    %1946 = vmatprep.subr.mxu0 0.0
    %1947 = vmatpush1.msra.mxu0 0.0
    %1948 = vmatprep.subr.mxu0 0.0
    %1949 = vmatpush1.msra.mxu0 0.0
    %1950 = vmatprep.subr.mxu0 0.0
    %1951 = vmatpush1.msra.mxu0 0.0
    %1952 = vmatprep.subr.mxu0 0.0
    %1953 = vmatpush1.msra.mxu0 0.0
    %1954 = vmatprep.subr.mxu0 0.0
    %1955 = vmatpush1.msra.mxu0 0.0
    %1956 = vmatprep.subr.mxu0 0.0
    %1957 = vmatpush1.msra.mxu0 0.0
    %1958 = vmatprep.subr.mxu0 0.0
    %1959 = vmatpush1.msra.mxu0 0.0
    %1960 = vmatprep.mubr.f32.mxu0 0.0
    %1961 = vmatmul.mubr.f32.gmra.mrb[0].mxu0 %v1894
    %v1962 = vpop.f32.mrb[0].mxu0
    %v1963 = vadd.f32 0.0, %v1962
    %v1964 = vpop.f32.mrb[0].mxu0
    %1965 = vdwg.mxu0
    %1966 = vrot.lane.b32.xlu0 %v649, 104
    %v1967 = vpop.permute.xlu0 %1966
    %1968 = vrot.lane.b32.xlu0 %v654, 104
    %v1969 = vpop.permute.xlu0 %1968
    %v1973 = vsel %vm816, %v1886, 0
    %1975 = vmatprep.subr.mxu0 0.0
    %1976 = vmatpush1.msra.mxu0 %v1967
    %1977 = vmatprep.subr.mxu0 0.0
    %1978 = vmatpush1.msra.mxu0 %v1969
    %1979 = vmatprep.subr.mxu0 0.0
    %1980 = vmatpush1.msra.mxu0 0.0
    %1981 = vmatprep.subr.mxu0 0.0
    %1982 = vmatpush1.msra.mxu0 0.0
    %1983 = vmatprep.subr.mxu0 0.0
    %1984 = vmatpush1.msra.mxu0 0.0
    %1985 = vmatprep.subr.mxu0 0.0
    %1986 = vmatpush1.msra.mxu0 0.0
    %1987 = vmatprep.subr.mxu0 0.0
    %1988 = vmatpush1.msra.mxu0 0.0
    %1989 = vmatprep.subr.mxu0 0.0
    %1990 = vmatpush1.msra.mxu0 0.0
    %1991 = vmatprep.subr.mxu0 0.0
    %1992 = vmatpush1.msra.mxu0 0.0
    %1993 = vmatprep.subr.mxu0 0.0
    %1994 = vmatpush1.msra.mxu0 0.0
    %1995 = vmatprep.subr.mxu0 0.0
    %1996 = vmatpush1.msra.mxu0 0.0
    %1997 = vmatprep.subr.mxu0 0.0
    %1998 = vmatpush1.msra.mxu0 0.0
    %1999 = vmatprep.subr.mxu0 0.0
    %2000 = vmatpush1.msra.mxu0 0.0
    %2001 = vmatprep.subr.mxu0 0.0
    %2002 = vmatpush1.msra.mxu0 0.0
    %2003 = vmatprep.subr.mxu0 0.0
    %2004 = vmatpush1.msra.mxu0 0.0
    %2005 = vmatprep.subr.mxu0 0.0
    %2006 = vmatpush1.msra.mxu0 0.0
    %2007 = vmatprep.subr.mxu0 0.0
    %2008 = vmatpush1.msra.mxu0 0.0
    %2009 = vmatprep.subr.mxu0 0.0
    %2010 = vmatpush1.msra.mxu0 0.0
    %2011 = vmatprep.subr.mxu0 0.0
    %2012 = vmatpush1.msra.mxu0 0.0
    %2013 = vmatprep.subr.mxu0 0.0
    %2014 = vmatpush1.msra.mxu0 0.0
    %2015 = vmatprep.subr.mxu0 0.0
    %2016 = vmatpush1.msra.mxu0 0.0
    %2017 = vmatprep.subr.mxu0 0.0
    %2018 = vmatpush1.msra.mxu0 0.0
    %2019 = vmatprep.subr.mxu0 0.0
    %2020 = vmatpush1.msra.mxu0 0.0
    %2021 = vmatprep.subr.mxu0 0.0
    %2022 = vmatpush1.msra.mxu0 0.0
    %2023 = vmatprep.subr.mxu0 0.0
    %2024 = vmatpush1.msra.mxu0 0.0
    %2025 = vmatprep.subr.mxu0 0.0
    %2026 = vmatpush1.msra.mxu0 0.0
    %2027 = vmatprep.subr.mxu0 0.0
    %2028 = vmatpush1.msra.mxu0 0.0
    %2029 = vmatprep.subr.mxu0 0.0
    %2030 = vmatpush1.msra.mxu0 0.0
    %2031 = vmatprep.subr.mxu0 0.0
    %2032 = vmatpush1.msra.mxu0 0.0
    %2033 = vmatprep.subr.mxu0 0.0
    %2034 = vmatpush1.msra.mxu0 0.0
    %2035 = vmatprep.subr.mxu0 0.0
    %2036 = vmatpush1.msra.mxu0 0.0
    %2037 = vmatprep.subr.mxu0 0.0
    %2038 = vmatpush1.msra.mxu0 0.0
    %2039 = vmatprep.mubr.f32.mxu0 0.0
    %2040 = vmatmul.mubr.f32.gmra.mrb[0].mxu0 %v1973
    %v2041 = vpop.f32.mrb[0].mxu0
    %v2042 = vadd.f32 0.0, %v2041
    %v2043 = vpop.f32.mrb[0].mxu0
    %2044 = vdwg.mxu0
    %2047 = vrot.lane.b32.xlu0 %v1963, 24
    %v2048 = vpop.permute.xlu0 %2047
    %2049 = vrot.lane.b32.xlu0 %v2042, 24
    %v2050 = vpop.permute.xlu0 %2049
    %vm2053 = vcmask 261312
    %2054 = vst.msk [vmem:[#allocation2] sm:$0xff] %vm2053, %v2048
    %2055 = vst.msk [vmem:[#allocation2 + $0x8] sm:$0xff] %vm2053, %v2050
    %v2056 = vld [vmem:[#allocation2] sm:$0xff]
    %v2057 = vld [vmem:[#allocation2 + $0x8] sm:$0xff]
    %v2058 = vld [vmem:[#allocation15] sm:$0xff]
    %v2059 = vld [vmem:[#allocation15 + $0x8] sm:$0xff]
    %v2060 = vld [vmem:[#allocation15 + $0x10] sm:$0xff]
    %v2061 = vld [vmem:[#allocation15 + $0x18] sm:$0xff]
    %v2062 = vld [vmem:[%s14] sm:$0x1]
    %v2064 = vlaneseq
    %v2065 = vshrl.u32 %v2064, 7
    %v2066 = vsub.s32 0, %v2065
    %v2067 = vrot.slane %v2062, %v2066
    %v2070 = vsel %vm174, %v2056, 0
    %v2073 = vsel %vm174, %v2057, 0
    %2075 = vmatprep.subr.mxu0 0.0
    %2076 = vmatpush1.msra.mxu0 %v2058
    %2077 = vmatprep.subr.mxu0 0.0
    %2078 = vmatpush1.msra.mxu0 %v2059
    %2079 = vmatprep.subr.mxu0 0.0
    %2080 = vmatpush1.msra.mxu0 %v2060
    %2081 = vmatprep.subr.mxu0 0.0
    %2082 = vmatpush1.msra.mxu0 %v2061
    %2083 = vmatprep.subr.mxu0 0.0
    %2084 = vmatpush1.msra.mxu0 0.0
    %2085 = vmatprep.subr.mxu0 0.0
    %2086 = vmatpush1.msra.mxu0 0.0
    %2087 = vmatprep.subr.mxu0 0.0
    %2088 = vmatpush1.msra.mxu0 0.0
    %2089 = vmatprep.subr.mxu0 0.0
    %2090 = vmatpush1.msra.mxu0 0.0
    %2091 = vmatprep.subr.mxu0 0.0
    %2092 = vmatpush1.msra.mxu0 0.0
    %2093 = vmatprep.subr.mxu0 0.0
    %2094 = vmatpush1.msra.mxu0 0.0
    %2095 = vmatprep.subr.mxu0 0.0
    %2096 = vmatpush1.msra.mxu0 0.0
    %2097 = vmatprep.subr.mxu0 0.0
    %2098 = vmatpush1.msra.mxu0 0.0
    %2099 = vmatprep.subr.mxu0 0.0
    %2100 = vmatpush1.msra.mxu0 0.0
    %2101 = vmatprep.subr.mxu0 0.0
    %2102 = vmatpush1.msra.mxu0 0.0
    %2103 = vmatprep.subr.mxu0 0.0
    %2104 = vmatpush1.msra.mxu0 0.0
    %2105 = vmatprep.subr.mxu0 0.0
    %2106 = vmatpush1.msra.mxu0 0.0
    %2107 = vmatprep.subr.mxu0 0.0
    %2108 = vmatpush1.msra.mxu0 0.0
    %2109 = vmatprep.subr.mxu0 0.0
    %2110 = vmatpush1.msra.mxu0 0.0
    %2111 = vmatprep.subr.mxu0 0.0
    %2112 = vmatpush1.msra.mxu0 0.0
    %2113 = vmatprep.subr.mxu0 0.0
    %2114 = vmatpush1.msra.mxu0 0.0
    %2115 = vmatprep.subr.mxu0 0.0
    %2116 = vmatpush1.msra.mxu0 0.0
    %2117 = vmatprep.subr.mxu0 0.0
    %2118 = vmatpush1.msra.mxu0 0.0
    %2119 = vmatprep.subr.mxu0 0.0
    %2120 = vmatpush1.msra.mxu0 0.0
    %2121 = vmatprep.subr.mxu0 0.0
    %2122 = vmatpush1.msra.mxu0 0.0
    %2123 = vmatprep.subr.mxu0 0.0
    %2124 = vmatpush1.msra.mxu0 0.0
    %2125 = vmatprep.subr.mxu0 0.0
    %2126 = vmatpush1.msra.mxu0 0.0
    %2127 = vmatprep.subr.mxu0 0.0
    %2128 = vmatpush1.msra.mxu0 0.0
    %2129 = vmatprep.subr.mxu0 0.0
    %2130 = vmatpush1.msra.mxu0 0.0
    %2131 = vmatprep.subr.mxu0 0.0
    %2132 = vmatpush1.msra.mxu0 0.0
    %2133 = vmatprep.subr.mxu0 0.0
    %2134 = vmatpush1.msra.mxu0 0.0
    %2135 = vmatprep.subr.mxu0 0.0
    %2136 = vmatpush1.msra.mxu0 0.0
    %2137 = vmatprep.subr.mxu0 0.0
    %2138 = vmatpush1.msra.mxu0 0.0
    %2139 = vmatprep.mubr.f32.mxu0 0.0
    %2140 = vmatmul.mubr.f32.gmra.mrb[0].mxu0 %v2070
    %v2141 = vpop.f32.mrb[0].mxu0
    %v2142 = vadd.f32 %v2067, %v2141
    %v2143 = vpop.f32.mrb[0].mxu0
    %2144 = vmatprep.mubr.f32.mxu0 0.0
    %2145 = vmatmul.mubr.f32.gmra.mrb[0].mxu0 %v2073
    %v2146 = vpop.f32.mrb[0].mxu0
    %v2147 = vadd.f32 %v2067, %v2146
    %v2148 = vpop.f32.mrb[0].mxu0
    %2149 = vdwg.mxu0
    %2150 = vst.msk [vmem:[#allocation17] sm:$0xff] %vm174, %v2142
    %2151 = vst.msk [vmem:[#allocation17 + $0x8] sm:$0xff] %vm174, %v2147
    // Predicated region
    $region94: #{tpu_custom_call.1} parent=1 // pred_check
      _
    $region95: #{tpu_custom_call.1} parent=1 // pred_check_branch
      %2153 = sbr.rel (0) target = $region97
    $region96: #{tpu_custom_call.1} parent=1 // pred_region
      %s2155 = ssub.s32 256, 256
      %2156 = vsyncadd [#allocation5], %s2155
      %s2157 = sshll.u32 [#allocation17], 4
      %s2158 = int_to_ptr.vmem [resolvable:$true] %s2157
      %2163 = dma.vmem_to_hbm [thread:$0]  %s2158, 256, %s15, [#allocation5], 128, 128, 8
    $region97: #{tpu_custom_call.1} parent=1 // pred_fallthru
      _
    // Predicated region
    $region98: #{tpu_custom_call.1} parent=1 // pred_check
      _
    $region99: #{tpu_custom_call.1} parent=1 // pred_check_branch
      %2165 = sbr.rel (0) target = $region101
    $region100: #{tpu_custom_call.1} parent=1 // pred_region
      %2166 = dma.done [#allocation5], 256
    $region101: #{tpu_custom_call.1} parent=1 // pred_fallthru
      _
    %2167 = vsyncpa [#allocation4], 1
    %2168 = vsyncpa [#allocation7], 1
    %2169 = vsyncpa [#allocation10], 1
    %2170 = vsyncpa [#allocation13], 1
    %2171 = vsyncpa [#allocation16], 1
    %2172 = vsyncpa [#allocation5], 1

</llo_original>
